<compile_context>
chip_gen: v7x
topology: tpu7x:2x2x1
jax: 0.10.0
libtpu: 0.0.40
codegen_flags: <defaults>
</compile_context>

<pallas_src>
import jax
import jax.numpy as jnp
from jax.experimental import pallas as pl
from jax.experimental.pallas import tpu as pltpu

EPS = 1e-5


def _layernorm(x, g, b):
    # x: (N, D), g/b: (1, D). PyTorch LayerNorm (biased variance, eps=1e-5), f32 math.
    mu = jnp.mean(x, axis=-1, keepdims=True)
    xc = x - mu
    var = jnp.mean(xc * xc, axis=-1, keepdims=True)
    return xc * jax.lax.rsqrt(var + EPS) * g + b


# --------------------------------------------------------------------------- #
# Fused whole-network kernel. Grid = (B, depth); one program = one sequence row
# through one transformer layer. The running activation is carried across the
# depth axis in VMEM scratch (acc_ref); the final LayerNorm runs on the last
# depth step and is the only write to o_ref.
# --------------------------------------------------------------------------- #
def transformer_kernel(x_ref,
                       ag_ref, ab_ref, wqkv_ref, wo_ref,
                       fg_ref, fb_ref, w1_ref, b1_ref, w2_ref, b2_ref,
                       lng_ref, lnb_ref,
                       o_ref, acc_ref):
    layer = pl.program_id(1)
    n_layers = pl.num_programs(1)

    # First layer of each batch row: load the input activation into the carrier.
    @pl.when(layer == 0)
    def _():
        acc_ref[...] = x_ref[...]

    x = acc_ref[...]                                  # (N, D) f32
    N, D = x.shape
    H = wqkv_ref.shape[0]
    E = wqkv_ref.shape[2] // 3

    # ------------------------------ Attention ------------------------------ #
    xn = _layernorm(x, ag_ref[...], ab_ref[...])      # f32 elementwise
    xh = jnp.broadcast_to(xn.astype(jnp.bfloat16), (H, N, D))

    # Fused per-head QKV projection: natural MXU orientation (contract d on
    # lhs-lane / rhs-sublane), output lane width 3*E per head, f32 accumulation.
    # Attention scale (dim_head**-0.5) is pre-folded into the q columns.
    qkv = jnp.einsum('hnd,hdf->hnf', xh, wqkv_ref[...],
                     preferred_element_type=jnp.float32)        # (H, N, 3E)
    q = qkv[..., 0 * E:1 * E].astype(jnp.bfloat16)
    k = qkv[..., 1 * E:2 * E].astype(jnp.bfloat16)
    v = qkv[..., 2 * E:3 * E].astype(jnp.bfloat16)

    dots = jnp.einsum('hne,hme->hnm', q, k,
                      preferred_element_type=jnp.float32)       # (H, N, N)
    dots = dots - jnp.max(dots, axis=-1, keepdims=True)
    p = jnp.exp(dots)                                            # f32 EUP
    denom = jnp.sum(p, axis=-1, keepdims=True)                   # (H, N, 1)

    # PV first, normalize after: reciprocal hits an (H,N,E) tensor instead of (H,N,N).
    ctx = jnp.einsum('hnm,hme->hne', p.astype(jnp.bfloat16), v,
                     preferred_element_type=jnp.float32)        # (H, N, E)
    ctx = ctx * pl.reciprocal(denom, approx=True)

    # Output projection folded per head; head-sum == concat(h d) @ W_out.
    y = jnp.einsum('hne,hed->hnd', ctx.astype(jnp.bfloat16), wo_ref[...],
                   preferred_element_type=jnp.float32)          # (H, N, D)
    x1 = jnp.sum(y, axis=0) + x                                  # residual

    # ----------------------------- FeedForward ----------------------------- #
    xn2 = _layernorm(x1, fg_ref[...], fb_ref[...])
    h = jnp.dot(xn2.astype(jnp.bfloat16), w1_ref[...],
                preferred_element_type=jnp.float32) + b1_ref[...]
    # exact (erf-based) GELU, matching torch.nn.GELU() default, f32
    h = 0.5 * h * (1.0 + jax.lax.erf(h * (2.0 ** -0.5)))
    y2 = jnp.dot(h.astype(jnp.bfloat16), w2_ref[...],
                 preferred_element_type=jnp.float32) + b2_ref[...]
    x2 = y2 + x1                                                 # residual

    acc_ref[...] = x2                                            # carry to next layer

    # Final LayerNorm fused into the last layer step; only write to o_ref.
    @pl.when(layer == n_layers - 1)
    def _():
        o_ref[...] = _layernorm(x2, lng_ref[...], lnb_ref[...]).astype(o_ref.dtype)


# --------------------------------------------------------------------------- #
# pallas_call wrapper
# --------------------------------------------------------------------------- #
def _vmem_limit_bytes():
    # ~3/4 of the generation's VMEM: ~48 MiB on v7x (64 MiB), ~96 MiB on v5e/v6e (128 MiB).
    try:
        info = pltpu.get_tpu_info()
        cap = int(getattr(info, "vmem_capacity_bytes", 64 * 1024 * 1024))
        return max(32 * 1024 * 1024, min((cap * 3) // 4, 112 * 1024 * 1024))
    except Exception:
        return 48 * 1024 * 1024


def transformer_forward(w, x):
    """w: prepared/stacked weights from prepare_params(); x: (B, N, D) f32."""
    B, N, D = x.shape
    depth, H, _, F = w["wqkv"].shape
    E = F // 3
    M = w["w1"].shape[2]

    xmap = lambda b, l: (b, 0, 0)          # activation row b, same block across depth
    lmap3 = lambda b, l: (l, 0, 0)         # per-layer 2-D weight
    lmap4 = lambda b, l: (l, 0, 0, 0)      # per-layer 3-D (head-batched) weight
    cmap = lambda b, l: (0, 0)             # constants (final LN)

    flops = B * depth * (2 * H * N * D * F            # fused qkv projection
                         + 2 * 2 * H * N * N * E      # scores + PV
                         + 2 * H * N * E * D          # output projection
                         + 2 * 2 * N * D * M)         # feed-forward
    transcendentals = B * depth * (H * N * N + N * M)
    weight_bytes = ((w["wqkv"].size + w["wo"].size + w["w1"].size + w["w2"].size) * 2
                    + (w["ag"].size + w["ab"].size + w["fg"].size + w["fb"].size
                       + w["b1"].size + w["b2"].size) * 4)
    bytes_accessed = 2 * B * N * D * 4 + B * weight_bytes

    return pl.pallas_call(
        transformer_kernel,
        out_shape=jax.ShapeDtypeStruct((B, N, D), x.dtype),
        grid=(B, depth),
        in_specs=[
            pl.BlockSpec((None, N, D), xmap),          # x
            pl.BlockSpec((None, 1, D), lmap3),         # attn LN gamma
            pl.BlockSpec((None, 1, D), lmap3),         # attn LN beta
            pl.BlockSpec((None, H, D, F), lmap4),      # fused qkv weight (bf16)
            pl.BlockSpec((None, H, E, D), lmap4),      # output proj weight (bf16)
            pl.BlockSpec((None, 1, D), lmap3),         # ff LN gamma
            pl.BlockSpec((None, 1, D), lmap3),         # ff LN beta
            pl.BlockSpec((None, D, M), lmap3),         # ff w1 (bf16)
            pl.BlockSpec((None, 1, M), lmap3),         # ff b1
            pl.BlockSpec((None, M, D), lmap3),         # ff w2 (bf16)
            pl.BlockSpec((None, 1, D), lmap3),         # ff b2
            pl.BlockSpec((1, D), cmap),                # final LN gamma
            pl.BlockSpec((1, D), cmap),                # final LN beta
        ],
        out_specs=pl.BlockSpec((None, N, D), xmap),
        scratch_shapes=[pltpu.VMEM((N, D), jnp.float32)],   # running activation
        compiler_params=pltpu.CompilerParams(
            dimension_semantics=("parallel", "arbitrary"),
            vmem_limit_bytes=_vmem_limit_bytes(),
        ),
        cost_estimate=pl.CostEstimate(flops=flops,
                                      transcendentals=transcendentals,
                                      bytes_accessed=bytes_accessed),
    )(x, w["ag"], w["ab"], w["wqkv"], w["wo"], w["fg"], w["fb"],
      w["w1"], w["b1"], w["w2"], w["b2"], w["lng"], w["lnb"])


# --------------------------------------------------------------------------- #
# Parameter construction + one-time weight prep
# --------------------------------------------------------------------------- #
def init_params(key, dim, depth, heads, dim_head, mlp_dim):
    # Per-head attention weights stored PyTorch-style as (heads, dim_head, dim):
    #   wq/wk/wv == to_qkv.weight (3*inner, dim) chunked + reshaped (row-major),
    #   wo == to_out.weight (dim, inner) transposed + reshaped.
    # FF weights are (in_features, out_features) == torch Linear weight.T.
    params = {"layers": []}
    for _ in range(depth):
        key, k1, k2, k3, k4, k5, k6 = jax.random.split(key, 7)
        params["layers"].append({
            "attn_ln_g": jnp.ones((1, dim), jnp.float32),
            "attn_ln_b": jnp.zeros((1, dim), jnp.float32),
            "wq": 0.02 * jax.random.normal(k1, (heads, dim_head, dim), jnp.float32),
            "wk": 0.02 * jax.random.normal(k2, (heads, dim_head, dim), jnp.float32),
            "wv": 0.02 * jax.random.normal(k3, (heads, dim_head, dim), jnp.float32),
            "wo": 0.02 * jax.random.normal(k4, (heads, dim_head, dim), jnp.float32),
            "ff_ln_g": jnp.ones((1, dim), jnp.float32),
            "ff_ln_b": jnp.zeros((1, dim), jnp.float32),
            "w1": 0.02 * jax.random.normal(k5, (dim, mlp_dim), jnp.float32),
            "b1": jnp.zeros((1, mlp_dim), jnp.float32),
            "w2": 0.02 * jax.random.normal(k6, (mlp_dim, dim), jnp.float32),
            "b2": jnp.zeros((1, dim), jnp.float32),
        })
    params["final_ln_g"] = jnp.ones((1, dim), jnp.float32)
    params["final_ln_b"] = jnp.zeros((1, dim), jnp.float32)
    return params


def prepare_params(params):
    """One-time host-side prep (call ONCE, outside the jitted forward):
    stack per-layer weights along a depth axis, pack q|k|v per head into a single
    (H, D, 3E) matrix with the attention scale folded into the q columns, and cast
    all matmul weights to bf16 (LN params / biases stay f32)."""
    layers = params["layers"]
    H, E, _ = layers[0]["wq"].shape
    scale = E ** (-0.5)

    def stack(fn):
        return jnp.stack([fn(l) for l in layers], axis=0)

    # (H, 3E, D) -> (H, D, 3E): q|k|v columns per head, natural MXU orientation.
    wqkv = stack(lambda l: jnp.swapaxes(
        jnp.concatenate([l["wq"] * scale, l["wk"], l["wv"]], axis=1), 1, 2))

    return {
        "ag": stack(lambda l: l["attn_ln_g"]),
        "ab": stack(lambda l: l["attn_ln_b"]),
        "wqkv": wqkv.astype(jnp.bfloat16),               # (depth, H, D, 3E)
        "wo": stack(lambda l: l["wo"]).astype(jnp.bfloat16),   # (depth, H, E, D)
        "fg": stack(lambda l: l["ff_ln_g"]),
        "fb": stack(lambda l: l["ff_ln_b"]),
        "w1": stack(lambda l: l["w1"]).astype(jnp.bfloat16),   # (depth, D, M)
        "b1": stack(lambda l: l["b1"]),
        "w2": stack(lambda l: l["w2"]).astype(jnp.bfloat16),   # (depth, M, D)
        "b2": stack(lambda l: l["b2"]),
        "lng": params["final_ln_g"],
        "lnb": params["final_ln_b"],
    }


if __name__ == "__main__":
    # Small config consistent with the module: dim=32, depth=2, heads=4, dim_head=8, mlp_dim=64
    B, N = 2, 8
    dim, depth, heads, dim_head, mlp_dim = 32, 2, 4, 8, 64

    key = jax.random.PRNGKey(0)
    key, xk = jax.random.split(key)
    x = jax.random.normal(xk, (B, N, dim), jnp.float32)

    params = init_params(key, dim, depth, heads, dim_head, mlp_dim)
    prepped = jax.block_until_ready(prepare_params(params))   # weight prep runs once

    fwd = jax.jit(transformer_forward)
    out = fwd(prepped, x)
    jax.block_until_ready(out)

    assert out.shape == (B, N, dim) and out.dtype == jnp.float32
    assert bool(jnp.all(jnp.isfinite(out)))
    print("KERNEL_OK")
</pallas_src>

<mosaic_0001>
module attributes {stable_mosaic.version = 11 : i64} {
  func.func @transformer_kernel(%arg0: i32, %arg1: i32, %arg2: memref<1x8x32xf32, #tpu.memory_space<vmem>>, %arg3: memref<1x1x32xf32, #tpu.memory_space<vmem>>, %arg4: memref<1x1x32xf32, #tpu.memory_space<vmem>>, %arg5: memref<1x4x32x24xbf16, #tpu.memory_space<vmem>>, %arg6: memref<1x4x8x32xbf16, #tpu.memory_space<vmem>>, %arg7: memref<1x1x32xf32, #tpu.memory_space<vmem>>, %arg8: memref<1x1x32xf32, #tpu.memory_space<vmem>>, %arg9: memref<1x32x64xbf16, #tpu.memory_space<vmem>>, %arg10: memref<1x1x64xf32, #tpu.memory_space<vmem>>, %arg11: memref<1x64x32xbf16, #tpu.memory_space<vmem>>, %arg12: memref<1x1x32xf32, #tpu.memory_space<vmem>>, %arg13: memref<1x32xf32, #tpu.memory_space<vmem>>, %arg14: memref<1x32xf32, #tpu.memory_space<vmem>>, %arg15: memref<1x8x32xf32, #tpu.memory_space<vmem>>, %arg16: memref<8x32xf32, #tpu.memory_space<vmem>>) attributes {dimension_semantics = [#tpu.dimension_semantics<parallel>, #tpu.dimension_semantics<arbitrary>], iteration_bounds = array<i64: 2, 2>, scalar_prefetch = 0 : i64, scratch_operands = 1 : i64, tpu.core_type = #tpu.core_type<tc>, window_params = [{transform_indices = @transform_0, window_bounds = array<i64: 1, 8, 32>}, {transform_indices = @transform_1, window_bounds = array<i64: 1, 1, 32>}, {transform_indices = @transform_2, window_bounds = array<i64: 1, 1, 32>}, {transform_indices = @transform_3, window_bounds = array<i64: 1, 4, 32, 24>}, {transform_indices = @transform_4, window_bounds = array<i64: 1, 4, 8, 32>}, {transform_indices = @transform_5, window_bounds = array<i64: 1, 1, 32>}, {transform_indices = @transform_6, window_bounds = array<i64: 1, 1, 32>}, {transform_indices = @transform_7, window_bounds = array<i64: 1, 32, 64>}, {transform_indices = @transform_8, window_bounds = array<i64: 1, 1, 64>}, {transform_indices = @transform_9, window_bounds = array<i64: 1, 64, 32>}, {transform_indices = @transform_10, window_bounds = array<i64: 1, 1, 32>}, {pipeline_mode = #tpu.pipeline_mode<synchronous>, transform_indices = @transform_11, window_bounds = array<i64: 1, 32>}, {pipeline_mode = #tpu.pipeline_mode<synchronous>, transform_indices = @transform_12, window_bounds = array<i64: 1, 32>}, {transform_indices = @transform_13, window_bounds = array<i64: 1, 8, 32>}]} {
    %c0_i32 = arith.constant 0 : i32
    %0 = arith.cmpi eq, %arg1, %c0_i32 : i32
    %1 = arith.extui %0 : i1 to i32
    %c0_i32_0 = arith.constant 0 : i32
    %2 = arith.cmpi ne, %1, %c0_i32_0 : i32
    scf.if %2 {
      %c0_58 = arith.constant 0 : index
      %c0_59 = arith.constant 0 : index
      %c0_60 = arith.constant 0 : index
      %112 = vector.load %arg2[%c0_58, %c0_59, %c0_60] : memref<1x8x32xf32, #tpu.memory_space<vmem>>, vector<1x8x32xf32>
      %113 = vector.shape_cast %112 : vector<1x8x32xf32> to vector<8x32xf32>
      %c0_61 = arith.constant 0 : index
      %c0_62 = arith.constant 0 : index
      %114 = vector.load %arg16[%c0_61, %c0_62] : memref<8x32xf32, #tpu.memory_space<vmem>>, vector<8x32xf32>
      tpu.vector_store %arg16[%c0_61, %c0_62], %113 {strides = array<i32>} : memref<8x32xf32, #tpu.memory_space<vmem>>, vector<8x32xf32>,
    } else {
    }
    %c0 = arith.constant 0 : index
    %c0_1 = arith.constant 0 : index
    %3 = vector.load %arg16[%c0, %c0_1] : memref<8x32xf32, #tpu.memory_space<vmem>>, vector<8x32xf32>
    %c0_2 = arith.constant 0 : index
    %c0_3 = arith.constant 0 : index
    %c0_4 = arith.constant 0 : index
    %4 = vector.load %arg3[%c0_2, %c0_3, %c0_4] : memref<1x1x32xf32, #tpu.memory_space<vmem>>, vector<1x1x32xf32>
    %5 = vector.shape_cast %4 : vector<1x1x32xf32> to vector<1x32xf32>
    %c0_5 = arith.constant 0 : index
    %c0_6 = arith.constant 0 : index
    %c0_7 = arith.constant 0 : index
    %6 = vector.load %arg4[%c0_5, %c0_6, %c0_7] : memref<1x1x32xf32, #tpu.memory_space<vmem>>, vector<1x1x32xf32>
    %7 = vector.shape_cast %6 : vector<1x1x32xf32> to vector<1x32xf32>
    %cst = arith.constant dense<0.000000e+00> : vector<8xf32>
    %8 = vector.multi_reduction <add>, %3, %cst [1] : vector<8x32xf32> to vector<8xf32>
    %9 = vector.shape_cast %8 : vector<8xf32> to vector<8x1xf32>
    %cst_8 = arith.constant 3.200000e+01 : f32
    %10 = vector.broadcast %cst_8 : f32 to vector<8x1xf32>
    %11 = arith.divf %9, %10 : vector<8x1xf32>
    %12 = vector.broadcast %11 : vector<8x1xf32> to vector<8x32xf32>
    %13 = arith.subf %3, %12 : vector<8x32xf32>
    %14 = arith.mulf %13, %13 : vector<8x32xf32>
    %cst_9 = arith.constant dense<0.000000e+00> : vector<8xf32>
    %15 = vector.multi_reduction <add>, %14, %cst_9 [1] : vector<8x32xf32> to vector<8xf32>
    %16 = vector.shape_cast %15 : vector<8xf32> to vector<8x1xf32>
    %cst_10 = arith.constant 3.200000e+01 : f32
    %17 = vector.broadcast %cst_10 : f32 to vector<8x1xf32>
    %18 = arith.divf %16, %17 : vector<8x1xf32>
    %cst_11 = arith.constant 9.99999974E-6 : f32
    %19 = vector.broadcast %cst_11 : f32 to vector<8x1xf32>
    %20 = arith.addf %18, %19 : vector<8x1xf32>
    %21 = math.rsqrt %20 : vector<8x1xf32>
    %22 = vector.broadcast %21 : vector<8x1xf32> to vector<8x32xf32>
    %23 = arith.mulf %13, %22 : vector<8x32xf32>
    %24 = vector.broadcast %5 : vector<1x32xf32> to vector<8x32xf32>
    %25 = arith.mulf %23, %24 : vector<8x32xf32>
    %26 = vector.broadcast %7 : vector<1x32xf32> to vector<8x32xf32>
    %27 = arith.addf %25, %26 : vector<8x32xf32>
    %28 = arith.truncf %27 : vector<8x32xf32> to vector<8x32xbf16>
    %29 = vector.shape_cast %28 : vector<8x32xbf16> to vector<1x8x32xbf16>
    %30 = vector.broadcast %29 : vector<1x8x32xbf16> to vector<4x8x32xbf16>
    %c0_12 = arith.constant 0 : index
    %c0_13 = arith.constant 0 : index
    %c0_14 = arith.constant 0 : index
    %c0_15 = arith.constant 0 : index
    %31 = vector.load %arg5[%c0_12, %c0_13, %c0_14, %c0_15] : memref<1x4x32x24xbf16, #tpu.memory_space<vmem>>, vector<1x4x32x24xbf16>
    %32 = vector.shape_cast %31 : vector<1x4x32x24xbf16> to vector<4x32x24xbf16>
    "tpu.trace_start"() <{level = 10 : i32, message = "hnd,hdf->hnf"}> : () -> ()
    %cst_16 = arith.constant dense<0.000000e+00> : vector<4x8x24xf32>
    %33 = tpu.matmul %30, %32, %cst_16 {dimension_numbers = #tpu.dot_dimension_numbers<[2], [1], [1], [2], [0, 0, 0, 1, 1, 2], [0], [0]>} : vector<4x8x32xbf16>, vector<4x32x24xbf16>, vector<4x8x24xf32> -> vector<4x8x24xf32>
    "tpu.trace_stop"() : () -> ()
    %34 = vector.extract_strided_slice %33 {offsets = [0, 0, 0], sizes = [4, 8, 8], strides = [1, 1, 1]} : vector<4x8x24xf32> to vector<4x8x8xf32>
    %35 = arith.truncf %34 : vector<4x8x8xf32> to vector<4x8x8xbf16>
    %36 = vector.extract_strided_slice %33 {offsets = [0, 0, 8], sizes = [4, 8, 8], strides = [1, 1, 1]} : vector<4x8x24xf32> to vector<4x8x8xf32>
    %37 = arith.truncf %36 : vector<4x8x8xf32> to vector<4x8x8xbf16>
    %38 = vector.extract_strided_slice %33 {offsets = [0, 0, 16], sizes = [4, 8, 8], strides = [1, 1, 1]} : vector<4x8x24xf32> to vector<4x8x8xf32>
    %39 = arith.truncf %38 : vector<4x8x8xf32> to vector<4x8x8xbf16>
    "tpu.trace_start"() <{level = 10 : i32, message = "hne,hme->hnm"}> : () -> ()
    %cst_17 = arith.constant dense<0.000000e+00> : vector<4x8x8xf32>
    %40 = tpu.matmul %35, %37, %cst_17 {dimension_numbers = #tpu.dot_dimension_numbers<[2], [2], [1], [1], [0, 0, 0, 1, 1, 1], [0], [0]>} : vector<4x8x8xbf16>, vector<4x8x8xbf16>, vector<4x8x8xf32> -> vector<4x8x8xf32>
    "tpu.trace_stop"() : () -> ()
    %cst_18 = arith.constant dense<0xFF800000> : vector<4x8xf32>
    %41 = vector.multi_reduction <maximumf>, %40, %cst_18 [2] : vector<4x8x8xf32> to vector<4x8xf32>
    %42 = vector.shape_cast %41 : vector<4x8xf32> to vector<4x8x1xf32>
    %43 = vector.broadcast %42 : vector<4x8x1xf32> to vector<4x8x8xf32>
    %44 = arith.subf %40, %43 : vector<4x8x8xf32>
    %45 = math.exp %44 : vector<4x8x8xf32>
    %cst_19 = arith.constant dense<0.000000e+00> : vector<4x8xf32>
    %46 = vector.multi_reduction <add>, %45, %cst_19 [2] : vector<4x8x8xf32> to vector<4x8xf32>
    %47 = vector.shape_cast %46 : vector<4x8xf32> to vector<4x8x1xf32>
    %48 = arith.truncf %45 : vector<4x8x8xf32> to vector<4x8x8xbf16>
    "tpu.trace_start"() <{level = 10 : i32, message = "hnm,hme->hne"}> : () -> ()
    %cst_20 = arith.constant dense<0.000000e+00> : vector<4x8x8xf32>
    %49 = tpu.matmul %48, %39, %cst_20 {dimension_numbers = #tpu.dot_dimension_numbers<[2], [1], [1], [2], [0, 0, 0, 1, 1, 2], [0], [0]>} : vector<4x8x8xbf16>, vector<4x8x8xbf16>, vector<4x8x8xf32> -> vector<4x8x8xf32>
    "tpu.trace_stop"() : () -> ()
    %50 = tpu.reciprocal %47 {approx = true} : vector<4x8x1xf32> -> vector<4x8x1xf32>
    %51 = vector.broadcast %50 : vector<4x8x1xf32> to vector<4x8x8xf32>
    %52 = arith.mulf %49, %51 : vector<4x8x8xf32>
    %53 = arith.truncf %52 : vector<4x8x8xf32> to vector<4x8x8xbf16>
    %c0_21 = arith.constant 0 : index
    %c0_22 = arith.constant 0 : index
    %c0_23 = arith.constant 0 : index
    %c0_24 = arith.constant 0 : index
    %54 = vector.load %arg6[%c0_21, %c0_22, %c0_23, %c0_24] : memref<1x4x8x32xbf16, #tpu.memory_space<vmem>>, vector<1x4x8x32xbf16>
    %55 = vector.shape_cast %54 : vector<1x4x8x32xbf16> to vector<4x8x32xbf16>
    "tpu.trace_start"() <{level = 10 : i32, message = "hne,hed->hnd"}> : () -> ()
    %cst_25 = arith.constant dense<0.000000e+00> : vector<4x8x32xf32>
    %56 = tpu.matmul %53, %55, %cst_25 {dimension_numbers = #tpu.dot_dimension_numbers<[2], [1], [1], [2], [0, 0, 0, 1, 1, 2], [0], [0]>} : vector<4x8x8xbf16>, vector<4x8x32xbf16>, vector<4x8x32xf32> -> vector<4x8x32xf32>
    "tpu.trace_stop"() : () -> ()
    %cst_26 = arith.constant dense<0.000000e+00> : vector<8x32xf32>
    %57 = vector.multi_reduction <add>, %56, %cst_26 [0] : vector<4x8x32xf32> to vector<8x32xf32>
    %58 = arith.addf %57, %3 : vector<8x32xf32>
    %c0_27 = arith.constant 0 : index
    %c0_28 = arith.constant 0 : index
    %c0_29 = arith.constant 0 : index
    %59 = vector.load %arg7[%c0_27, %c0_28, %c0_29] : memref<1x1x32xf32, #tpu.memory_space<vmem>>, vector<1x1x32xf32>
    %60 = vector.shape_cast %59 : vector<1x1x32xf32> to vector<1x32xf32>
    %c0_30 = arith.constant 0 : index
    %c0_31 = arith.constant 0 : index
    %c0_32 = arith.constant 0 : index
    %61 = vector.load %arg8[%c0_30, %c0_31, %c0_32] : memref<1x1x32xf32, #tpu.memory_space<vmem>>, vector<1x1x32xf32>
    %62 = vector.shape_cast %61 : vector<1x1x32xf32> to vector<1x32xf32>
    %cst_33 = arith.constant dense<0.000000e+00> : vector<8xf32>
    %63 = vector.multi_reduction <add>, %58, %cst_33 [1] : vector<8x32xf32> to vector<8xf32>
    %64 = vector.shape_cast %63 : vector<8xf32> to vector<8x1xf32>
    %cst_34 = arith.constant 3.200000e+01 : f32
    %65 = vector.broadcast %cst_34 : f32 to vector<8x1xf32>
    %66 = arith.divf %64, %65 : vector<8x1xf32>
    %67 = vector.broadcast %66 : vector<8x1xf32> to vector<8x32xf32>
    %68 = arith.subf %58, %67 : vector<8x32xf32>
    %69 = arith.mulf %68, %68 : vector<8x32xf32>
    %cst_35 = arith.constant dense<0.000000e+00> : vector<8xf32>
    %70 = vector.multi_reduction <add>, %69, %cst_35 [1] : vector<8x32xf32> to vector<8xf32>
    %71 = vector.shape_cast %70 : vector<8xf32> to vector<8x1xf32>
    %cst_36 = arith.constant 3.200000e+01 : f32
    %72 = vector.broadcast %cst_36 : f32 to vector<8x1xf32>
    %73 = arith.divf %71, %72 : vector<8x1xf32>
    %cst_37 = arith.constant 9.99999974E-6 : f32
    %74 = vector.broadcast %cst_37 : f32 to vector<8x1xf32>
    %75 = arith.addf %73, %74 : vector<8x1xf32>
    %76 = math.rsqrt %75 : vector<8x1xf32>
    %77 = vector.broadcast %76 : vector<8x1xf32> to vector<8x32xf32>
    %78 = arith.mulf %68, %77 : vector<8x32xf32>
    %79 = vector.broadcast %60 : vector<1x32xf32> to vector<8x32xf32>
    %80 = arith.mulf %78, %79 : vector<8x32xf32>
    %81 = vector.broadcast %62 : vector<1x32xf32> to vector<8x32xf32>
    %82 = arith.addf %80, %81 : vector<8x32xf32>
    %83 = arith.truncf %82 : vector<8x32xf32> to vector<8x32xbf16>
    %c0_38 = arith.constant 0 : index
    %c0_39 = arith.constant 0 : index
    %c0_40 = arith.constant 0 : index
    %84 = vector.load %arg9[%c0_38, %c0_39, %c0_40] : memref<1x32x64xbf16, #tpu.memory_space<vmem>>, vector<1x32x64xbf16>
    %85 = vector.shape_cast %84 : vector<1x32x64xbf16> to vector<32x64xbf16>
    %cst_41 = arith.constant dense<0.000000e+00> : vector<8x64xf32>
    %86 = tpu.matmul %83, %85, %cst_41 {dimension_numbers = #tpu.dot_dimension_numbers<[1], [0], [0], [1], [0, 0, 1, 1], [], []>} : vector<8x32xbf16>, vector<32x64xbf16>, vector<8x64xf32> -> vector<8x64xf32>
    %c0_42 = arith.constant 0 : index
    %c0_43 = arith.constant 0 : index
    %c0_44 = arith.constant 0 : index
    %87 = vector.load %arg10[%c0_42, %c0_43, %c0_44] : memref<1x1x64xf32, #tpu.memory_space<vmem>>, vector<1x1x64xf32>
    %88 = vector.shape_cast %87 : vector<1x1x64xf32> to vector<1x64xf32>
    %89 = vector.broadcast %88 : vector<1x64xf32> to vector<8x64xf32>
    %90 = arith.addf %86, %89 : vector<8x64xf32>
    %cst_45 = arith.constant 5.000000e-01 : f32
    %91 = vector.broadcast %cst_45 : f32 to vector<8x64xf32>
    %92 = arith.mulf %91, %90 : vector<8x64xf32>
    %cst_46 = arith.constant 0.707106769 : f32
    %93 = vector.broadcast %cst_46 : f32 to vector<8x64xf32>
    %94 = arith.mulf %90, %93 : vector<8x64xf32>
    %95 = math.erf %94 : vector<8x64xf32>
    %cst_47 = arith.constant 1.000000e+00 : f32
    %96 = vector.broadcast %cst_47 : f32 to vector<8x64xf32>
    %97 = arith.addf %96, %95 : vector<8x64xf32>
    %98 = arith.mulf %92, %97 : vector<8x64xf32>
    %99 = arith.truncf %98 : vector<8x64xf32> to vector<8x64xbf16>
    %c0_48 = arith.constant 0 : index
    %c0_49 = arith.constant 0 : index
    %c0_50 = arith.constant 0 : index
    %100 = vector.load %arg11[%c0_48, %c0_49, %c0_50] : memref<1x64x32xbf16, #tpu.memory_space<vmem>>, vector<1x64x32xbf16>
    %101 = vector.shape_cast %100 : vector<1x64x32xbf16> to vector<64x32xbf16>
    %cst_51 = arith.constant dense<0.000000e+00> : vector<8x32xf32>
    %102 = tpu.matmul %99, %101, %cst_51 {dimension_numbers = #tpu.dot_dimension_numbers<[1], [0], [0], [1], [0, 0, 1, 1], [], []>} : vector<8x64xbf16>, vector<64x32xbf16>, vector<8x32xf32> -> vector<8x32xf32>
    %c0_52 = arith.constant 0 : index
    %c0_53 = arith.constant 0 : index
    %c0_54 = arith.constant 0 : index
    %103 = vector.load %arg12[%c0_52, %c0_53, %c0_54] : memref<1x1x32xf32, #tpu.memory_space<vmem>>, vector<1x1x32xf32>
    %104 = vector.shape_cast %103 : vector<1x1x32xf32> to vector<1x32xf32>
    %105 = vector.broadcast %104 : vector<1x32xf32> to vector<8x32xf32>
    %106 = arith.addf %102, %105 : vector<8x32xf32>
    %107 = arith.addf %106, %58 : vector<8x32xf32>
    %c0_55 = arith.constant 0 : index
    %c0_56 = arith.constant 0 : index
    %108 = vector.load %arg16[%c0_55, %c0_56] : memref<8x32xf32, #tpu.memory_space<vmem>>, vector<8x32xf32>
    tpu.vector_store %arg16[%c0_55, %c0_56], %107 {strides = array<i32>} : memref<8x32xf32, #tpu.memory_space<vmem>>, vector<8x32xf32>,
    %c1_i32 = arith.constant 1 : i32
    %109 = arith.cmpi eq, %arg1, %c1_i32 : i32
    %110 = arith.extui %109 : i1 to i32
    %c0_i32_57 = arith.constant 0 : i32
    %111 = arith.cmpi ne, %110, %c0_i32_57 : i32
    scf.if %111 {
      %c0_58 = arith.constant 0 : index
      %c0_59 = arith.constant 0 : index
      %112 = vector.load %arg13[%c0_58, %c0_59] : memref<1x32xf32, #tpu.memory_space<vmem>>, vector<1x32xf32>
      %c0_60 = arith.constant 0 : index
      %c0_61 = arith.constant 0 : index
      %113 = vector.load %arg14[%c0_60, %c0_61] : memref<1x32xf32, #tpu.memory_space<vmem>>, vector<1x32xf32>
      %cst_62 = arith.constant dense<0.000000e+00> : vector<8xf32>
      %114 = vector.multi_reduction <add>, %107, %cst_62 [1] : vector<8x32xf32> to vector<8xf32>
      %115 = vector.shape_cast %114 : vector<8xf32> to vector<8x1xf32>
      %cst_63 = arith.constant 3.200000e+01 : f32
      %116 = vector.broadcast %cst_63 : f32 to vector<8x1xf32>
      %117 = arith.divf %115, %116 : vector<8x1xf32>
      %118 = vector.broadcast %117 : vector<8x1xf32> to vector<8x32xf32>
      %119 = arith.subf %107, %118 : vector<8x32xf32>
      %120 = arith.mulf %119, %119 : vector<8x32xf32>
      %cst_64 = arith.constant dense<0.000000e+00> : vector<8xf32>
      %121 = vector.multi_reduction <add>, %120, %cst_64 [1] : vector<8x32xf32> to vector<8xf32>
      %122 = vector.shape_cast %121 : vector<8xf32> to vector<8x1xf32>
      %cst_65 = arith.constant 3.200000e+01 : f32
      %123 = vector.broadcast %cst_65 : f32 to vector<8x1xf32>
      %124 = arith.divf %122, %123 : vector<8x1xf32>
      %cst_66 = arith.constant 9.99999974E-6 : f32
      %125 = vector.broadcast %cst_66 : f32 to vector<8x1xf32>
      %126 = arith.addf %124, %125 : vector<8x1xf32>
      %127 = math.rsqrt %126 : vector<8x1xf32>
      %128 = vector.broadcast %127 : vector<8x1xf32> to vector<8x32xf32>
      %129 = arith.mulf %119, %128 : vector<8x32xf32>
      %130 = vector.broadcast %112 : vector<1x32xf32> to vector<8x32xf32>
      %131 = arith.mulf %129, %130 : vector<8x32xf32>
      %132 = vector.broadcast %113 : vector<1x32xf32> to vector<8x32xf32>
      %133 = arith.addf %131, %132 : vector<8x32xf32>
      %c0_67 = arith.constant 0 : index
      %c0_68 = arith.constant 0 : index
      %c0_69 = arith.constant 0 : index
      %134 = vector.load %arg15[%c0_67, %c0_68, %c0_69] : memref<1x8x32xf32, #tpu.memory_space<vmem>>, vector<1x8x32xf32>
      %135 = vector.shape_cast %134 : vector<1x8x32xf32> to vector<8x32xf32>
      %136 = vector.shape_cast %133 : vector<8x32xf32> to vector<1x8x32xf32>
      tpu.vector_store %arg15[%c0_67, %c0_68, %c0_69], %136 {strides = array<i32>} : memref<1x8x32xf32, #tpu.memory_space<vmem>>, vector<1x8x32xf32>,
    } else {
    }
    return
  }
  func.func @transform_0(%arg0: i32, %arg1: i32) -> (i32, i32, i32) {
    %c0_i32 = arith.constant 0 : i32
    %c0_i32_0 = arith.constant 0 : i32
    %c0_i32_1 = arith.constant 0 : i32
    return %arg0, %c0_i32, %c0_i32_0 : i32, i32, i32
  }
  func.func @transform_1(%arg0: i32, %arg1: i32) -> (i32, i32, i32) {
    %c0_i32 = arith.constant 0 : i32
    %c0_i32_0 = arith.constant 0 : i32
    %c0_i32_1 = arith.constant 0 : i32
    return %arg1, %c0_i32, %c0_i32_0 : i32, i32, i32
  }
  func.func @transform_2(%arg0: i32, %arg1: i32) -> (i32, i32, i32) {
    %c0_i32 = arith.constant 0 : i32
    %c0_i32_0 = arith.constant 0 : i32
    %c0_i32_1 = arith.constant 0 : i32
    return %arg1, %c0_i32, %c0_i32_0 : i32, i32, i32
  }
  func.func @transform_3(%arg0: i32, %arg1: i32) -> (i32, i32, i32, i32) {
    %c0_i32 = arith.constant 0 : i32
    %c0_i32_0 = arith.constant 0 : i32
    %c0_i32_1 = arith.constant 0 : i32
    %c0_i32_2 = arith.constant 0 : i32
    return %arg1, %c0_i32, %c0_i32_0, %c0_i32_1 : i32, i32, i32, i32
  }
  func.func @transform_4(%arg0: i32, %arg1: i32) -> (i32, i32, i32, i32) {
    %c0_i32 = arith.constant 0 : i32
    %c0_i32_0 = arith.constant 0 : i32
    %c0_i32_1 = arith.constant 0 : i32
    %c0_i32_2 = arith.constant 0 : i32
    return %arg1, %c0_i32, %c0_i32_0, %c0_i32_1 : i32, i32, i32, i32
  }
  func.func @transform_5(%arg0: i32, %arg1: i32) -> (i32, i32, i32) {
    %c0_i32 = arith.constant 0 : i32
    %c0_i32_0 = arith.constant 0 : i32
    %c0_i32_1 = arith.constant 0 : i32
    return %arg1, %c0_i32, %c0_i32_0 : i32, i32, i32
  }
  func.func @transform_6(%arg0: i32, %arg1: i32) -> (i32, i32, i32) {
    %c0_i32 = arith.constant 0 : i32
    %c0_i32_0 = arith.constant 0 : i32
    %c0_i32_1 = arith.constant 0 : i32
    return %arg1, %c0_i32, %c0_i32_0 : i32, i32, i32
  }
  func.func @transform_7(%arg0: i32, %arg1: i32) -> (i32, i32, i32) {
    %c0_i32 = arith.constant 0 : i32
    %c0_i32_0 = arith.constant 0 : i32
    %c0_i32_1 = arith.constant 0 : i32
    return %arg1, %c0_i32, %c0_i32_0 : i32, i32, i32
  }
  func.func @transform_8(%arg0: i32, %arg1: i32) -> (i32, i32, i32) {
    %c0_i32 = arith.constant 0 : i32
    %c0_i32_0 = arith.constant 0 : i32
    %c0_i32_1 = arith.constant 0 : i32
    return %arg1, %c0_i32, %c0_i32_0 : i32, i32, i32
  }
  func.func @transform_9(%arg0: i32, %arg1: i32) -> (i32, i32, i32) {
    %c0_i32 = arith.constant 0 : i32
    %c0_i32_0 = arith.constant 0 : i32
    %c0_i32_1 = arith.constant 0 : i32
    return %arg1, %c0_i32, %c0_i32_0 : i32, i32, i32
  }
  func.func @transform_10(%arg0: i32, %arg1: i32) -> (i32, i32, i32) {
    %c0_i32 = arith.constant 0 : i32
    %c0_i32_0 = arith.constant 0 : i32
    %c0_i32_1 = arith.constant 0 : i32
    return %arg1, %c0_i32, %c0_i32_0 : i32, i32, i32
  }
  func.func @transform_11(%arg0: i32, %arg1: i32) -> (i32, i32) {
    %c0_i32 = arith.constant 0 : i32
    %c0_i32_0 = arith.constant 0 : i32
    %c0_i32_1 = arith.constant 0 : i32
    return %c0_i32, %c0_i32_0 : i32, i32
  }
  func.func @transform_12(%arg0: i32, %arg1: i32) -> (i32, i32) {
    %c0_i32 = arith.constant 0 : i32
    %c0_i32_0 = arith.constant 0 : i32
    %c0_i32_1 = arith.constant 0 : i32
    return %c0_i32, %c0_i32_0 : i32, i32
  }
  func.func @transform_13(%arg0: i32, %arg1: i32) -> (i32, i32, i32) {
    %c0_i32 = arith.constant 0 : i32
    %c0_i32_0 = arith.constant 0 : i32
    %c0_i32_1 = arith.constant 0 : i32
    return %arg0, %c0_i32, %c0_i32_0 : i32, i32, i32
  }
}

</mosaic_0001>

<llo_original>
// kernel: transformer_forward.1
$region0: #{transformer_forward.1}
  #allocation0 [shape = 'u32[]', space=smem, size = 0x4, offset = 0x4, fixed_abs, tag = 'smem constant byte address 0x4 - core index']
  #allocation1 [shape = 'u32[144,128]{1,0:T(1,128)}', space=vmem, size = 0x12000, scoped, tag = 'internal scratch']
  #allocation2 [shape = 'f32[8,32]{1,0:T(8,128)}', space=vmem, size = 0x1000, scoped, tag = 'scratch operand']
  %s0 = inlined_call_operand.vmem [shape: f32[2,8,32], index: 0, kind: input, shape index: {}]
  %s1 = inlined_call_operand.vmem [shape: f32[2,1,32], index: 1, kind: input, shape index: {}]
  %s2 = inlined_call_operand.vmem [shape: f32[2,1,32], index: 2, kind: input, shape index: {}]
  %s3 = inlined_call_operand.vmem [shape: bf16[2,4,32,24], index: 3, kind: input, shape index: {}]
  %s4 = inlined_call_operand.vmem [shape: bf16[2,4,8,32], index: 4, kind: input, shape index: {}]
  %s5 = inlined_call_operand.vmem [shape: f32[2,1,32], index: 5, kind: input, shape index: {}]
  %s6 = inlined_call_operand.vmem [shape: f32[2,1,32], index: 6, kind: input, shape index: {}]
  %s7 = inlined_call_operand.vmem [shape: bf16[2,32,64], index: 7, kind: input, shape index: {}]
  %s8 = inlined_call_operand.vmem [shape: f32[2,1,64], index: 8, kind: input, shape index: {}]
  %s9 = inlined_call_operand.vmem [shape: bf16[2,64,32], index: 9, kind: input, shape index: {}]
  %s10 = inlined_call_operand.vmem [shape: f32[2,1,32], index: 10, kind: input, shape index: {}]
  %s11 = inlined_call_operand.vmem [shape: f32[1,32], index: 11, kind: input, shape index: {}]
  %s12 = inlined_call_operand.vmem [shape: f32[1,32], index: 12, kind: input, shape index: {}]
  %s13 = inlined_call_operand.hbm [shape: f32[2,8,32], index: 13, kind: output, shape index: {}]
  %s14 = sld [smem:[#allocation0]]
  $region93: #{transformer_forward.1} parent=0
    _
  %s16 = ssub.s32 1, %s14
  %s17 = scalar_select 0, %s16, %s14
  $region1: #{transformer_forward.1} parent=0
    #allocation3 [shape = 'u8[8192]{0}', space=vmem, size = 0x2000, scoped, tag = 'output window, operand 0']
    #allocation4 [shape = 's32[2]{0}', space=sflag, size = 0x8, scoped, tag = 'scoped memory for transformer_forward.1']
    %18 = vsyncpa [#allocation4], 0
    %s19 = scalar_lea.sflag [#allocation4], 1
    %20 = vsyncpa %s19, 0
    loop: start=0, step=1, limit=6
    $region2: #{transformer_forward.1} parent=1 // loop_pre_header
      _
    $region3: #{transformer_forward.1} parent=1 // loop_header
      %s22 = sphi 0, %s26
      %p23 = scmp.ge.s32.totalorder %s22, 6
      %s29 = sphi 0, %s41
      %s30 = sphi 0, %s37
      %s31 = sphi 0, %s29
      %s32 = sphi 0, %s30
      %s33 = sphi 0, %s31
      %s34 = sphi 0, %s32
      %s44 = sphi 0, %s46
      %s47 = sphi 0, %s44
      %s48 = sphi 0, %s47
      %s64 = sphi 0, %s48
      %s70 = sphi 0, %s72
      %s73 = sphi 0, %s70
      %s74 = sphi 0, %s73
      %s90 = sphi 0, %s74
      %s96 = sphi 0, %s98
      %s99 = sphi 0, %s96
      %s100 = sphi 0, %s99
      %s116 = sphi 0, %s100
      %s122 = sphi 0, %s124
      %s125 = sphi 0, %s122
      %s126 = sphi 0, %s125
      %s142 = sphi 0, %s126
      %s148 = sphi 0, %s150
      %s151 = sphi 0, %s148
      %s152 = sphi 0, %s151
      %s168 = sphi 0, %s152
      %s174 = sphi 0, %s176
      %s177 = sphi 0, %s174
      %s178 = sphi 0, %s177
      %s194 = sphi 0, %s178
      %s200 = sphi 0, %s202
      %s203 = sphi 0, %s200
      %s204 = sphi 0, %s203
      %s220 = sphi 0, %s204
      %s226 = sphi 0, %s228
      %s229 = sphi 0, %s226
      %s230 = sphi 0, %s229
      %s246 = sphi 0, %s230
      %s252 = sphi 0, %s254
      %s255 = sphi 0, %s252
      %s256 = sphi 0, %s255
      %s272 = sphi 0, %s256
      %s278 = sphi 0, %s280
      %s281 = sphi 0, %s278
      %s282 = sphi 0, %s281
      %s298 = sphi 0, %s282
      %s304 = sphi 0, %s306
      %s307 = sphi 0, %s304
      %s308 = sphi 0, %s307
      %s324 = sphi 0, %s308
      %s328 = sphi 0, %s328
      %s330 = sphi 0, %s328
      %s331 = sphi 0, %s330
      %s345 = sphi 0, %s331
      %s349 = sphi 0, %s349
      %s351 = sphi 0, %s349
      %s352 = sphi 0, %s351
      %s366 = sphi 0, %s352
      %s372 = sphi 0, %s374
      %s375 = sphi 0, %s372
      %s376 = sphi 0, %s375
      %s392 = sphi 0, %s376
    $region4: #{transformer_forward.1} parent=1 // loop_header_branch
      %25 = sbr.rel (%p23) target = $region8
    $region5: #{transformer_forward.1} parent=1 // loop_body
      %s27 = ssub.s32 %s22, 1
      %s28 = ssub.s32 %s22, 2
      %s35 = sadd.s32 1, %s30
      %p36 = scmp.ge.s32.totalorder %s35, 2
      %s37 = scalar_select %p36, 0, %s35
      %s38 = sadd.s32 1, %s29
      %s39 = scalar_select %p36, %s38, %s29
      %p40 = scmp.ge.s32.totalorder %s39, 2
      %s41 = scalar_select %p40, 0, %s39
      %s42 = ssub.s32 %s29, %s41
      %p43 = scmp.eq.s32.totalorder %s42, 0
      %s45 = sadd.s32 %s44, 1
      %s46 = scalar_select %p43, %s44, %s45
      %p49 = pneg %p43
      %p50 = scmp.eq.s32.totalorder %s22, 3
      %p51 = por %p49, %p50
      %p52 = scmp.ne.s32.totalorder %s44, %s47
      %p53 = scmp.eq.s32.totalorder %s22, 0
      %p54 = por %p52, %p53
      %p55 = scmp.ne.s32.totalorder %s44, %s47
      %p56 = scmp.eq.s32.totalorder %s27, 3
      %p57 = por %p55, %p56
      %p58 = scmp.ne.s32.totalorder %s47, %s48
      %p59 = scmp.eq.s32.totalorder %s27, 0
      %p60 = por %p58, %p59
      %p61 = scmp.ne.s32.totalorder %s47, %s48
      %p62 = scmp.eq.s32.totalorder %s28, 3
      %p63 = por %p61, %p62
      %p65 = scmp.ne.s32.totalorder %s48, %s64
      %p66 = scmp.eq.s32.totalorder %s28, 0
      %p67 = por %p65, %p66
      %s68 = ssub.s32 %s30, %s37
      %p69 = scmp.eq.s32.totalorder %s68, 0
      %s71 = sadd.s32 %s70, 1
      %s72 = scalar_select %p69, %s70, %s71
      %p75 = pneg %p69
      %p76 = scmp.eq.s32.totalorder %s22, 3
      %p77 = por %p75, %p76
      %p78 = scmp.ne.s32.totalorder %s70, %s73
      %p79 = scmp.eq.s32.totalorder %s22, 0
      %p80 = por %p78, %p79
      %p81 = scmp.ne.s32.totalorder %s70, %s73
      %p82 = scmp.eq.s32.totalorder %s27, 3
      %p83 = por %p81, %p82
      %p84 = scmp.ne.s32.totalorder %s73, %s74
      %p85 = scmp.eq.s32.totalorder %s27, 0
      %p86 = por %p84, %p85
      %p87 = scmp.ne.s32.totalorder %s73, %s74
      %p88 = scmp.eq.s32.totalorder %s28, 3
      %p89 = por %p87, %p88
      %p91 = scmp.ne.s32.totalorder %s74, %s90
      %p92 = scmp.eq.s32.totalorder %s28, 0
      %p93 = por %p91, %p92
      %s94 = ssub.s32 %s30, %s37
      %p95 = scmp.eq.s32.totalorder %s94, 0
      %s97 = sadd.s32 %s96, 1
      %s98 = scalar_select %p95, %s96, %s97
      %p101 = pneg %p95
      %p102 = scmp.eq.s32.totalorder %s22, 3
      %p103 = por %p101, %p102
      %p104 = scmp.ne.s32.totalorder %s96, %s99
      %p105 = scmp.eq.s32.totalorder %s22, 0
      %p106 = por %p104, %p105
      %p107 = scmp.ne.s32.totalorder %s96, %s99
      %p108 = scmp.eq.s32.totalorder %s27, 3
      %p109 = por %p107, %p108
      %p110 = scmp.ne.s32.totalorder %s99, %s100
      %p111 = scmp.eq.s32.totalorder %s27, 0
      %p112 = por %p110, %p111
      %p113 = scmp.ne.s32.totalorder %s99, %s100
      %p114 = scmp.eq.s32.totalorder %s28, 3
      %p115 = por %p113, %p114
      %p117 = scmp.ne.s32.totalorder %s100, %s116
      %p118 = scmp.eq.s32.totalorder %s28, 0
      %p119 = por %p117, %p118
      %s120 = ssub.s32 %s30, %s37
      %p121 = scmp.eq.s32.totalorder %s120, 0
      %s123 = sadd.s32 %s122, 1
      %s124 = scalar_select %p121, %s122, %s123
      %p127 = pneg %p121
      %p128 = scmp.eq.s32.totalorder %s22, 3
      %p129 = por %p127, %p128
      %p130 = scmp.ne.s32.totalorder %s122, %s125
      %p131 = scmp.eq.s32.totalorder %s22, 0
      %p132 = por %p130, %p131
      %p133 = scmp.ne.s32.totalorder %s122, %s125
      %p134 = scmp.eq.s32.totalorder %s27, 3
      %p135 = por %p133, %p134
      %p136 = scmp.ne.s32.totalorder %s125, %s126
      %p137 = scmp.eq.s32.totalorder %s27, 0
      %p138 = por %p136, %p137
      %p139 = scmp.ne.s32.totalorder %s125, %s126
      %p140 = scmp.eq.s32.totalorder %s28, 3
      %p141 = por %p139, %p140
      %p143 = scmp.ne.s32.totalorder %s126, %s142
      %p144 = scmp.eq.s32.totalorder %s28, 0
      %p145 = por %p143, %p144
      %s146 = ssub.s32 %s30, %s37
      %p147 = scmp.eq.s32.totalorder %s146, 0
      %s149 = sadd.s32 %s148, 1
      %s150 = scalar_select %p147, %s148, %s149
      %p153 = pneg %p147
      %p154 = scmp.eq.s32.totalorder %s22, 3
      %p155 = por %p153, %p154
      %p156 = scmp.ne.s32.totalorder %s148, %s151
      %p157 = scmp.eq.s32.totalorder %s22, 0
      %p158 = por %p156, %p157
      %p159 = scmp.ne.s32.totalorder %s148, %s151
      %p160 = scmp.eq.s32.totalorder %s27, 3
      %p161 = por %p159, %p160
      %p162 = scmp.ne.s32.totalorder %s151, %s152
      %p163 = scmp.eq.s32.totalorder %s27, 0
      %p164 = por %p162, %p163
      %p165 = scmp.ne.s32.totalorder %s151, %s152
      %p166 = scmp.eq.s32.totalorder %s28, 3
      %p167 = por %p165, %p166
      %p169 = scmp.ne.s32.totalorder %s152, %s168
      %p170 = scmp.eq.s32.totalorder %s28, 0
      %p171 = por %p169, %p170
      %s172 = ssub.s32 %s30, %s37
      %p173 = scmp.eq.s32.totalorder %s172, 0
      %s175 = sadd.s32 %s174, 1
      %s176 = scalar_select %p173, %s174, %s175
      %p179 = pneg %p173
      %p180 = scmp.eq.s32.totalorder %s22, 3
      %p181 = por %p179, %p180
      %p182 = scmp.ne.s32.totalorder %s174, %s177
      %p183 = scmp.eq.s32.totalorder %s22, 0
      %p184 = por %p182, %p183
      %p185 = scmp.ne.s32.totalorder %s174, %s177
      %p186 = scmp.eq.s32.totalorder %s27, 3
      %p187 = por %p185, %p186
      %p188 = scmp.ne.s32.totalorder %s177, %s178
      %p189 = scmp.eq.s32.totalorder %s27, 0
      %p190 = por %p188, %p189
      %p191 = scmp.ne.s32.totalorder %s177, %s178
      %p192 = scmp.eq.s32.totalorder %s28, 3
      %p193 = por %p191, %p192
      %p195 = scmp.ne.s32.totalorder %s178, %s194
      %p196 = scmp.eq.s32.totalorder %s28, 0
      %p197 = por %p195, %p196
      %s198 = ssub.s32 %s30, %s37
      %p199 = scmp.eq.s32.totalorder %s198, 0
      %s201 = sadd.s32 %s200, 1
      %s202 = scalar_select %p199, %s200, %s201
      %p205 = pneg %p199
      %p206 = scmp.eq.s32.totalorder %s22, 3
      %p207 = por %p205, %p206
      %p208 = scmp.ne.s32.totalorder %s200, %s203
      %p209 = scmp.eq.s32.totalorder %s22, 0
      %p210 = por %p208, %p209
      %p211 = scmp.ne.s32.totalorder %s200, %s203
      %p212 = scmp.eq.s32.totalorder %s27, 3
      %p213 = por %p211, %p212
      %p214 = scmp.ne.s32.totalorder %s203, %s204
      %p215 = scmp.eq.s32.totalorder %s27, 0
      %p216 = por %p214, %p215
      %p217 = scmp.ne.s32.totalorder %s203, %s204
      %p218 = scmp.eq.s32.totalorder %s28, 3
      %p219 = por %p217, %p218
      %p221 = scmp.ne.s32.totalorder %s204, %s220
      %p222 = scmp.eq.s32.totalorder %s28, 0
      %p223 = por %p221, %p222
      %s224 = ssub.s32 %s30, %s37
      %p225 = scmp.eq.s32.totalorder %s224, 0
      %s227 = sadd.s32 %s226, 1
      %s228 = scalar_select %p225, %s226, %s227
      %p231 = pneg %p225
      %p232 = scmp.eq.s32.totalorder %s22, 3
      %p233 = por %p231, %p232
      %p234 = scmp.ne.s32.totalorder %s226, %s229
      %p235 = scmp.eq.s32.totalorder %s22, 0
      %p236 = por %p234, %p235
      %p237 = scmp.ne.s32.totalorder %s226, %s229
      %p238 = scmp.eq.s32.totalorder %s27, 3
      %p239 = por %p237, %p238
      %p240 = scmp.ne.s32.totalorder %s229, %s230
      %p241 = scmp.eq.s32.totalorder %s27, 0
      %p242 = por %p240, %p241
      %p243 = scmp.ne.s32.totalorder %s229, %s230
      %p244 = scmp.eq.s32.totalorder %s28, 3
      %p245 = por %p243, %p244
      %p247 = scmp.ne.s32.totalorder %s230, %s246
      %p248 = scmp.eq.s32.totalorder %s28, 0
      %p249 = por %p247, %p248
      %s250 = ssub.s32 %s30, %s37
      %p251 = scmp.eq.s32.totalorder %s250, 0
      %s253 = sadd.s32 %s252, 1
      %s254 = scalar_select %p251, %s252, %s253
      %p257 = pneg %p251
      %p258 = scmp.eq.s32.totalorder %s22, 3
      %p259 = por %p257, %p258
      %p260 = scmp.ne.s32.totalorder %s252, %s255
      %p261 = scmp.eq.s32.totalorder %s22, 0
      %p262 = por %p260, %p261
      %p263 = scmp.ne.s32.totalorder %s252, %s255
      %p264 = scmp.eq.s32.totalorder %s27, 3
      %p265 = por %p263, %p264
      %p266 = scmp.ne.s32.totalorder %s255, %s256
      %p267 = scmp.eq.s32.totalorder %s27, 0
      %p268 = por %p266, %p267
      %p269 = scmp.ne.s32.totalorder %s255, %s256
      %p270 = scmp.eq.s32.totalorder %s28, 3
      %p271 = por %p269, %p270
      %p273 = scmp.ne.s32.totalorder %s256, %s272
      %p274 = scmp.eq.s32.totalorder %s28, 0
      %p275 = por %p273, %p274
      %s276 = ssub.s32 %s30, %s37
      %p277 = scmp.eq.s32.totalorder %s276, 0
      %s279 = sadd.s32 %s278, 1
      %s280 = scalar_select %p277, %s278, %s279
      %p283 = pneg %p277
      %p284 = scmp.eq.s32.totalorder %s22, 3
      %p285 = por %p283, %p284
      %p286 = scmp.ne.s32.totalorder %s278, %s281
      %p287 = scmp.eq.s32.totalorder %s22, 0
      %p288 = por %p286, %p287
      %p289 = scmp.ne.s32.totalorder %s278, %s281
      %p290 = scmp.eq.s32.totalorder %s27, 3
      %p291 = por %p289, %p290
      %p292 = scmp.ne.s32.totalorder %s281, %s282
      %p293 = scmp.eq.s32.totalorder %s27, 0
      %p294 = por %p292, %p293
      %p295 = scmp.ne.s32.totalorder %s281, %s282
      %p296 = scmp.eq.s32.totalorder %s28, 3
      %p297 = por %p295, %p296
      %p299 = scmp.ne.s32.totalorder %s282, %s298
      %p300 = scmp.eq.s32.totalorder %s28, 0
      %p301 = por %p299, %p300
      %s302 = ssub.s32 %s30, %s37
      %p303 = scmp.eq.s32.totalorder %s302, 0
      %s305 = sadd.s32 %s304, 1
      %s306 = scalar_select %p303, %s304, %s305
      %p309 = pneg %p303
      %p310 = scmp.eq.s32.totalorder %s22, 3
      %p311 = por %p309, %p310
      %p312 = scmp.ne.s32.totalorder %s304, %s307
      %p313 = scmp.eq.s32.totalorder %s22, 0
      %p314 = por %p312, %p313
      %p315 = scmp.ne.s32.totalorder %s304, %s307
      %p316 = scmp.eq.s32.totalorder %s27, 3
      %p317 = por %p315, %p316
      %p318 = scmp.ne.s32.totalorder %s307, %s308
      %p319 = scmp.eq.s32.totalorder %s27, 0
      %p320 = por %p318, %p319
      %p321 = scmp.ne.s32.totalorder %s307, %s308
      %p322 = scmp.eq.s32.totalorder %s28, 3
      %p323 = por %p321, %p322
      %p325 = scmp.ne.s32.totalorder %s308, %s324
      %p326 = scmp.eq.s32.totalorder %s28, 0
      %p327 = por %p325, %p326
      %s329 = sadd.s32 %s328, 1
      %p332 = scmp.eq.s32.totalorder %s22, 3
      %p333 = scmp.ne.s32.totalorder %s328, %s330
      %p334 = scmp.eq.s32.totalorder %s22, 0
      %p335 = por %p333, %p334
      %p336 = scmp.ne.s32.totalorder %s328, %s330
      %p337 = scmp.eq.s32.totalorder %s27, 3
      %p338 = por %p336, %p337
      %p339 = scmp.ne.s32.totalorder %s330, %s331
      %p340 = scmp.eq.s32.totalorder %s27, 0
      %p341 = por %p339, %p340
      %p342 = scmp.ne.s32.totalorder %s330, %s331
      %p343 = scmp.eq.s32.totalorder %s28, 3
      %p344 = por %p342, %p343
      %p346 = scmp.ne.s32.totalorder %s331, %s345
      %p347 = scmp.eq.s32.totalorder %s28, 0
      %p348 = por %p346, %p347
      %s350 = sadd.s32 %s349, 1
      %p353 = scmp.eq.s32.totalorder %s22, 3
      %p354 = scmp.ne.s32.totalorder %s349, %s351
      %p355 = scmp.eq.s32.totalorder %s22, 0
      %p356 = por %p354, %p355
      %p357 = scmp.ne.s32.totalorder %s349, %s351
      %p358 = scmp.eq.s32.totalorder %s27, 3
      %p359 = por %p357, %p358
      %p360 = scmp.ne.s32.totalorder %s351, %s352
      %p361 = scmp.eq.s32.totalorder %s27, 0
      %p362 = por %p360, %p361
      %p363 = scmp.ne.s32.totalorder %s351, %s352
      %p364 = scmp.eq.s32.totalorder %s28, 3
      %p365 = por %p363, %p364
      %p367 = scmp.ne.s32.totalorder %s352, %s366
      %p368 = scmp.eq.s32.totalorder %s28, 0
      %p369 = por %p367, %p368
      %s370 = ssub.s32 %s29, %s41
      %p371 = scmp.eq.s32.totalorder %s370, 0
      %s373 = sadd.s32 %s372, 1
      %s374 = scalar_select %p371, %s372, %s373
      %p377 = pneg %p371
      %p378 = scmp.eq.s32.totalorder %s22, 3
      %p379 = por %p377, %p378
      %p380 = scmp.ne.s32.totalorder %s372, %s375
      %p381 = scmp.eq.s32.totalorder %s22, 0
      %p382 = por %p380, %p381
      %p383 = scmp.ne.s32.totalorder %s372, %s375
      %p384 = scmp.eq.s32.totalorder %s27, 3
      %p385 = por %p383, %p384
      %p386 = scmp.ne.s32.totalorder %s375, %s376
      %p387 = scmp.eq.s32.totalorder %s27, 0
      %p388 = por %p386, %p387
      %p389 = scmp.ne.s32.totalorder %s375, %s376
      %p390 = scmp.eq.s32.totalorder %s28, 3
      %p391 = por %p389, %p390
      %p393 = scmp.ne.s32.totalorder %s376, %s392
      %p394 = scmp.eq.s32.totalorder %s28, 0
      %p395 = por %p393, %p394
      %p396 = scmp.le.s32.totalorder 1, %s22
      %p397 = scmp.lt.s32.totalorder %s22, 5
      %p398 = pnand %p396, %p397
      %p399 = pneg %p398
      // Predicated region
      $region9: #{transformer_forward.1} parent=5 // pred_check
        _
      $region10: #{transformer_forward.1} parent=5 // pred_check_branch
        %401 = sbr.rel (%p398) target = $region12
      $region11: #{transformer_forward.1} parent=5 // pred_region
        %s402 = ssub.s32 %s22, 1
        // Predicated region
        $region13: #{transformer_forward.1} parent=11 // pred_check
          %p403 = pneg %p341
        $region14: #{transformer_forward.1} parent=11 // pred_check_branch
          %405 = sbr.rel (%p403) target = $region16
        $region15: #{transformer_forward.1} parent=11 // pred_region
          _
        $region16: #{transformer_forward.1} parent=11 // pred_fallthru
          _
        // Predicated region
        $region17: #{transformer_forward.1} parent=11 // pred_check
          %p406 = pneg %p362
        $region18: #{transformer_forward.1} parent=11 // pred_check_branch
          %408 = sbr.rel (%p406) target = $region20
        $region19: #{transformer_forward.1} parent=11 // pred_region
          _
        $region20: #{transformer_forward.1} parent=11 // pred_fallthru
          _
      $region12: #{transformer_forward.1} parent=5 // pred_fallthru
        _
      %p409 = scmp.lt.s32.totalorder %s22, 4
      // Predicated region
      $region21: #{transformer_forward.1} parent=5 // pred_check
        %p410 = pneg %p409
      $region22: #{transformer_forward.1} parent=5 // pred_check_branch
        %412 = sbr.rel (%p410) target = $region24
      $region23: #{transformer_forward.1} parent=5 // pred_region
        // Predicated region
        $region25: #{transformer_forward.1} parent=23 // pred_check
          %p413 = pneg %p54
        $region26: #{transformer_forward.1} parent=23 // pred_check_branch
          %415 = sbr.rel (%p413) target = $region28
        $region27: #{transformer_forward.1} parent=23 // pred_region
          %p416 = scmp.lt.s32.totalorder %s29, 1
          %s417 = scalar_select %p416, %s29, 1
          %s418 = smul.addr %s417, 8
          %s419 = scalar_lea.vmem %s0, %s418
        $region28: #{transformer_forward.1} parent=23 // pred_fallthru
          _
        // Predicated region
        $region29: #{transformer_forward.1} parent=23 // pred_check
          %p420 = pneg %p80
        $region30: #{transformer_forward.1} parent=23 // pred_check_branch
          %422 = sbr.rel (%p420) target = $region32
        $region31: #{transformer_forward.1} parent=23 // pred_region
          %p423 = scmp.lt.s32.totalorder %s30, 1
          %s424 = scalar_select %p423, %s30, 1
          %s425 = scalar_lea.vmem %s1, %s424
        $region32: #{transformer_forward.1} parent=23 // pred_fallthru
          _
        // Predicated region
        $region33: #{transformer_forward.1} parent=23 // pred_check
          %p426 = pneg %p106
        $region34: #{transformer_forward.1} parent=23 // pred_check_branch
          %428 = sbr.rel (%p426) target = $region36
        $region35: #{transformer_forward.1} parent=23 // pred_region
          %p429 = scmp.lt.s32.totalorder %s30, 1
          %s430 = scalar_select %p429, %s30, 1
          %s431 = scalar_lea.vmem %s2, %s430
        $region36: #{transformer_forward.1} parent=23 // pred_fallthru
          _
        // Predicated region
        $region37: #{transformer_forward.1} parent=23 // pred_check
          %p432 = pneg %p132
        $region38: #{transformer_forward.1} parent=23 // pred_check_branch
          %434 = sbr.rel (%p432) target = $region40
        $region39: #{transformer_forward.1} parent=23 // pred_region
          %p435 = scmp.lt.s32.totalorder %s30, 1
          %s436 = scalar_select %p435, %s30, 1
          %s437 = smul.addr %s436, 16
          %s438 = smul.addr %s437, 4
          %s439 = scalar_lea.vmem %s3, %s438
        $region40: #{transformer_forward.1} parent=23 // pred_fallthru
          _
        // Predicated region
        $region41: #{transformer_forward.1} parent=23 // pred_check
          %p440 = pneg %p158
        $region42: #{transformer_forward.1} parent=23 // pred_check_branch
          %442 = sbr.rel (%p440) target = $region44
        $region43: #{transformer_forward.1} parent=23 // pred_region
          %p443 = scmp.lt.s32.totalorder %s30, 1
          %s444 = scalar_select %p443, %s30, 1
          %s445 = smul.addr %s444, 4
          %s446 = smul.addr %s445, 4
          %s447 = scalar_lea.vmem %s4, %s446
        $region44: #{transformer_forward.1} parent=23 // pred_fallthru
          _
        // Predicated region
        $region45: #{transformer_forward.1} parent=23 // pred_check
          %p448 = pneg %p184
        $region46: #{transformer_forward.1} parent=23 // pred_check_branch
          %450 = sbr.rel (%p448) target = $region48
        $region47: #{transformer_forward.1} parent=23 // pred_region
          %p451 = scmp.lt.s32.totalorder %s30, 1
          %s452 = scalar_select %p451, %s30, 1
          %s453 = scalar_lea.vmem %s5, %s452
        $region48: #{transformer_forward.1} parent=23 // pred_fallthru
          _
        // Predicated region
        $region49: #{transformer_forward.1} parent=23 // pred_check
          %p454 = pneg %p210
        $region50: #{transformer_forward.1} parent=23 // pred_check_branch
          %456 = sbr.rel (%p454) target = $region52
        $region51: #{transformer_forward.1} parent=23 // pred_region
          %p457 = scmp.lt.s32.totalorder %s30, 1
          %s458 = scalar_select %p457, %s30, 1
          %s459 = scalar_lea.vmem %s6, %s458
        $region52: #{transformer_forward.1} parent=23 // pred_fallthru
          _
        // Predicated region
        $region53: #{transformer_forward.1} parent=23 // pred_check
          %p460 = pneg %p236
        $region54: #{transformer_forward.1} parent=23 // pred_check_branch
          %462 = sbr.rel (%p460) target = $region56
        $region55: #{transformer_forward.1} parent=23 // pred_region
          %p463 = scmp.lt.s32.totalorder %s30, 1
          %s464 = scalar_select %p463, %s30, 1
          %s465 = smul.addr %s464, 4
          %s466 = smul.addr %s465, 4
          %s467 = scalar_lea.vmem %s7, %s466
        $region56: #{transformer_forward.1} parent=23 // pred_fallthru
          _
        // Predicated region
        $region57: #{transformer_forward.1} parent=23 // pred_check
          %p468 = pneg %p262
        $region58: #{transformer_forward.1} parent=23 // pred_check_branch
          %470 = sbr.rel (%p468) target = $region60
        $region59: #{transformer_forward.1} parent=23 // pred_region
          %p471 = scmp.lt.s32.totalorder %s30, 1
          %s472 = scalar_select %p471, %s30, 1
          %s473 = scalar_lea.vmem %s8, %s472
        $region60: #{transformer_forward.1} parent=23 // pred_fallthru
          _
        // Predicated region
        $region61: #{transformer_forward.1} parent=23 // pred_check
          %p474 = pneg %p288
        $region62: #{transformer_forward.1} parent=23 // pred_check_branch
          %476 = sbr.rel (%p474) target = $region64
        $region63: #{transformer_forward.1} parent=23 // pred_region
          %p477 = scmp.lt.s32.totalorder %s30, 1
          %s478 = scalar_select %p477, %s30, 1
          %s479 = smul.addr %s478, 8
          %s480 = smul.addr %s479, 4
          %s481 = scalar_lea.vmem %s9, %s480
        $region64: #{transformer_forward.1} parent=23 // pred_fallthru
          _
        // Predicated region
        $region65: #{transformer_forward.1} parent=23 // pred_check
          %p482 = pneg %p314
        $region66: #{transformer_forward.1} parent=23 // pred_check_branch
          %484 = sbr.rel (%p482) target = $region68
        $region67: #{transformer_forward.1} parent=23 // pred_region
          %p485 = scmp.lt.s32.totalorder %s30, 1
          %s486 = scalar_select %p485, %s30, 1
          %s487 = scalar_lea.vmem %s10, %s486
        $region68: #{transformer_forward.1} parent=23 // pred_fallthru
          _
      $region24: #{transformer_forward.1} parent=5 // pred_fallthru
        _
      %p488 = scmp.le.s32.totalorder 1, %s22
      %p489 = scmp.lt.s32.totalorder %s22, 5
      %p490 = pnand %p488, %p489
      %p491 = pneg %p490
      // Predicated region
      $region69: #{transformer_forward.1} parent=5 // pred_check
        _
      $region70: #{transformer_forward.1} parent=5 // pred_check_branch
        %493 = sbr.rel (%p490) target = $region72
      $region71: #{transformer_forward.1} parent=5 // pred_region
        %s494 = ssub.s32 %s22, 1
        %p495 = scmp.lt.s32.totalorder %s31, 1
        %s496 = scalar_select %p495, %s31, 1
        %s497 = smul.addr %s496, 8
        %s498 = scalar_lea.vmem %s0, %s497
        %p499 = pneg %p60
        %p500 = pneg %p57
        %p501 = scmp.lt.s32.totalorder %s32, 1
        %s502 = scalar_select %p501, %s32, 1
        %s503 = scalar_lea.vmem %s1, %s502
        %p504 = pneg %p86
        %p505 = pneg %p83
        %p506 = scmp.lt.s32.totalorder %s32, 1
        %s507 = scalar_select %p506, %s32, 1
        %s508 = scalar_lea.vmem %s2, %s507
        %p509 = pneg %p112
        %p510 = pneg %p109
        %p511 = scmp.lt.s32.totalorder %s32, 1
        %s512 = scalar_select %p511, %s32, 1
        %s513 = smul.addr %s512, 16
        %s514 = smul.addr %s513, 4
        %s515 = scalar_lea.vmem %s3, %s514
        %p516 = pneg %p138
        %p517 = pneg %p135
        %p518 = scmp.lt.s32.totalorder %s32, 1
        %s519 = scalar_select %p518, %s32, 1
        %s520 = smul.addr %s519, 4
        %s521 = smul.addr %s520, 4
        %s522 = scalar_lea.vmem %s4, %s521
        %p523 = pneg %p164
        %p524 = pneg %p161
        %p525 = scmp.lt.s32.totalorder %s32, 1
        %s526 = scalar_select %p525, %s32, 1
        %s527 = scalar_lea.vmem %s5, %s526
        %p528 = pneg %p190
        %p529 = pneg %p187
        %p530 = scmp.lt.s32.totalorder %s32, 1
        %s531 = scalar_select %p530, %s32, 1
        %s532 = scalar_lea.vmem %s6, %s531
        %p533 = pneg %p216
        %p534 = pneg %p213
        %p535 = scmp.lt.s32.totalorder %s32, 1
        %s536 = scalar_select %p535, %s32, 1
        %s537 = smul.addr %s536, 4
        %s538 = smul.addr %s537, 4
        %s539 = scalar_lea.vmem %s7, %s538
        %p540 = pneg %p242
        %p541 = pneg %p239
        %p542 = scmp.lt.s32.totalorder %s32, 1
        %s543 = scalar_select %p542, %s32, 1
        %s544 = scalar_lea.vmem %s8, %s543
        %p545 = pneg %p268
        %p546 = pneg %p265
        %p547 = scmp.lt.s32.totalorder %s32, 1
        %s548 = scalar_select %p547, %s32, 1
        %s549 = smul.addr %s548, 8
        %s550 = smul.addr %s549, 4
        %s551 = scalar_lea.vmem %s9, %s550
        %p552 = pneg %p294
        %p553 = pneg %p291
        %p554 = scmp.lt.s32.totalorder %s32, 1
        %s555 = scalar_select %p554, %s32, 1
        %s556 = scalar_lea.vmem %s10, %s555
        %p557 = pneg %p320
        %p558 = pneg %p317
        %p559 = pneg %p341
        %p560 = pneg %p338
        %p561 = pneg %p362
        %p562 = pneg %p359
        %p563 = pneg %p388
        %p564 = pneg %p385
        %s565 = sand.u32 %s375, 1
        %s566 = scalar_lea.sflag [#allocation4], %s565
        %s567 = sand.u32 %s375, 1
        %s568 = smul.addr %s567, 8
        %s569 = scalar_lea.vmem [#allocation3], %s568
        %p570 = scmp.lt.s32.totalorder %s31, 1
        %s571 = scalar_select %p570, %s31, 1
        %s572 = smul.addr %s571, 8
        %s573 = scalar_lea.vmem %s0, %s572
        %p574 = scmp.lt.s32.totalorder %s32, 1
        %s575 = scalar_select %p574, %s32, 1
        %s576 = scalar_lea.vmem %s1, %s575
        %p577 = scmp.lt.s32.totalorder %s32, 1
        %s578 = scalar_select %p577, %s32, 1
        %s579 = scalar_lea.vmem %s2, %s578
        %p580 = scmp.lt.s32.totalorder %s32, 1
        %s581 = scalar_select %p580, %s32, 1
        %s582 = smul.addr %s581, 16
        %s583 = smul.addr %s582, 4
        %s584 = scalar_lea.vmem %s3, %s583
        %p585 = scmp.lt.s32.totalorder %s32, 1
        %s586 = scalar_select %p585, %s32, 1
        %s587 = smul.addr %s586, 4
        %s588 = smul.addr %s587, 4
        %s589 = scalar_lea.vmem %s4, %s588
        %p590 = scmp.lt.s32.totalorder %s32, 1
        %s591 = scalar_select %p590, %s32, 1
        %s592 = scalar_lea.vmem %s5, %s591
        %p593 = scmp.lt.s32.totalorder %s32, 1
        %s594 = scalar_select %p593, %s32, 1
        %s595 = scalar_lea.vmem %s6, %s594
        %p596 = scmp.lt.s32.totalorder %s32, 1
        %s597 = scalar_select %p596, %s32, 1
        %s598 = smul.addr %s597, 4
        %s599 = smul.addr %s598, 4
        %s600 = scalar_lea.vmem %s7, %s599
        %p601 = scmp.lt.s32.totalorder %s32, 1
        %s602 = scalar_select %p601, %s32, 1
        %s603 = scalar_lea.vmem %s8, %s602
        %p604 = scmp.lt.s32.totalorder %s32, 1
        %s605 = scalar_select %p604, %s32, 1
        %s606 = smul.addr %s605, 8
        %s607 = smul.addr %s606, 4
        %s608 = scalar_lea.vmem %s9, %s607
        %p609 = scmp.lt.s32.totalorder %s32, 1
        %s610 = scalar_select %p609, %s32, 1
        %s611 = scalar_lea.vmem %s10, %s610
        %p613 = scmp.eq.s32.totalorder %s32, 0
        // Predicated region
        $region73: #{transformer_forward.1} parent=71 // pred_check
          %p614 = pneg %p613
        $region74: #{transformer_forward.1} parent=71 // pred_check_branch
          %616 = sbr.rel (%p614) target = $region76
        $region75: #{transformer_forward.1} parent=71 // pred_region
          %v617 = vld [vmem:[%s573] sm:$0xff]
          %vm618 = vcmask 261120
          %619 = vst.msk [vmem:[#allocation2] sm:$0xff] %vm618, %v617
        $region76: #{transformer_forward.1} parent=71 // pred_fallthru
          _
        %v620 = vld [vmem:[#allocation2] sm:$0xff]
        %v621 = vld [vmem:[%s576] sm:$0x1]
        %v622 = vld [vmem:[%s579] sm:$0x1]
        %vm623 = vcmask 261120
        %v624 = vsel %vm623, %v620, 0.0
        %625 = vadd.xlane.f32.xlu0 %v624
        %v626 = vpop.xlane.xlu0 %625
        %v627 = vrcp.pop 32.0
        %v628 = vmul.f32 %v626, %v627
        %v629 = vsub.f32 %v620, %v628
        %v630 = vmul.f32 %v629, %v629
        %v631 = vsel %vm623, %v630, 0.0
        %632 = vadd.xlane.f32.xlu0 %v631
        %v633 = vpop.xlane.xlu0 %632
        %v634 = vmul.f32 %v633, %v627
        %v635 = vadd.f32 %v634, 1e-05
        %v636 = vrsqrt.pop %v635
        %v637 = vmul.f32 %v629, %v636
        %v639 = vlaneseq
        %v640 = vshrl.u32 %v639, 7
        %v641 = vsub.s32 0, %v640
        %v642 = vrot.slane %v621, %v641
        %v644 = vmul.f32 %v637, %v642
        %v646 = vlaneseq
        %v647 = vshrl.u32 %v646, 7
        %v648 = vsub.s32 0, %v647
        %v649 = vrot.slane %v622, %v648
        %v651 = vadd.f32 %v644, %v649
        %v652 = vpack.c.bf16 %v651, %v651
        %v653 = vld [vmem:[%s584] sm:$0xf]
        %v654 = vld [vmem:[%s584 + $0x4] sm:$0xf]
        %v655 = vld [vmem:[%s584 + $0x8] sm:$0xf]
        %v656 = vld [vmem:[%s584 + $0xc] sm:$0xf]
        %v657 = vld [vmem:[%s584 + $0x10] sm:$0xf]
        %v658 = vld [vmem:[%s584 + $0x14] sm:$0xf]
        %v659 = vld [vmem:[%s584 + $0x18] sm:$0xf]
        %v660 = vld [vmem:[%s584 + $0x1c] sm:$0xf]
        %v661 = vld [vmem:[%s584 + $0x20] sm:$0xf]
        %v662 = vld [vmem:[%s584 + $0x24] sm:$0xf]
        %v663 = vld [vmem:[%s584 + $0x28] sm:$0xf]
        %v664 = vld [vmem:[%s584 + $0x2c] sm:$0xf]
        %v665 = vld [vmem:[%s584 + $0x30] sm:$0xf]
        %v666 = vld [vmem:[%s584 + $0x34] sm:$0xf]
        %v667 = vld [vmem:[%s584 + $0x38] sm:$0xf]
        %v668 = vld [vmem:[%s584 + $0x3c] sm:$0xf]
        %v673 = vunpack.c.l.b16 %v653
        %v674 = vunpack.c.l.b16 %v654
        %v675 = vunpack.c.l.b16 %v655
        %v676 = vunpack.c.l.b16 %v656
        %v677 = vpack.c.b16 %v674, %v673
        %v678 = vpack.c.b16 %v676, %v675
        %v682 = vsel %vm623, %v652, 0
        %684 = vmatprep.subr.bf16.mxu0 0
        %685 = vmatpush1.bf16.msra.mxu0 %v677
        %686 = vmatprep.subr.bf16.mxu0 0
        %687 = vmatpush1.bf16.msra.mxu0 %v678
        %688 = vmatprep.subr.bf16.mxu0 0
        %689 = vmatpush1.bf16.msra.mxu0 0
        %690 = vmatprep.subr.bf16.mxu0 0
        %691 = vmatpush1.bf16.msra.mxu0 0
        %692 = vmatprep.subr.bf16.mxu0 0
        %693 = vmatpush1.bf16.msra.mxu0 0
        %694 = vmatprep.subr.bf16.mxu0 0
        %695 = vmatpush1.bf16.msra.mxu0 0
        %696 = vmatprep.subr.bf16.mxu0 0
        %697 = vmatpush1.bf16.msra.mxu0 0
        %698 = vmatprep.subr.bf16.mxu0 0
        %699 = vmatpush1.bf16.msra.mxu0 0
        %700 = vmatprep.subr.bf16.mxu0 0
        %701 = vmatpush1.bf16.msra.mxu0 0
        %702 = vmatprep.subr.bf16.mxu0 0
        %703 = vmatpush1.bf16.msra.mxu0 0
        %704 = vmatprep.subr.bf16.mxu0 0
        %705 = vmatpush1.bf16.msra.mxu0 0
        %706 = vmatprep.subr.bf16.mxu0 0
        %707 = vmatpush1.bf16.msra.mxu0 0
        %708 = vmatprep.subr.bf16.mxu0 0
        %709 = vmatpush1.bf16.msra.mxu0 0
        %710 = vmatprep.subr.bf16.mxu0 0
        %711 = vmatpush1.bf16.msra.mxu0 0
        %712 = vmatprep.subr.bf16.mxu0 0
        %713 = vmatpush1.bf16.msra.mxu0 0
        %714 = vmatprep.subr.bf16.mxu0 0
        %715 = vmatpush1.bf16.msra.mxu0 0
        %716 = vmatprep.mubr.bf16.mxu0 0
        %717 = vmatmul.mubr.bf16.gmra.mrb[0].mxu0 %v682
        %v718 = vpop.f32.mrb[0].mxu0
        %v719 = vadd.f32 0.0, %v718
        %v720 = vpop.f32.mrb[0].mxu0
        %v721 = vpop.f32.mrb[0].mxu0
        %v722 = vpop.f32.mrb[0].mxu0
        %723 = vdwg.mxu0
        %v728 = vunpack.c.l.b16 %v657
        %v729 = vunpack.c.l.b16 %v658
        %v730 = vunpack.c.l.b16 %v659
        %v731 = vunpack.c.l.b16 %v660
        %v732 = vpack.c.b16 %v729, %v728
        %v733 = vpack.c.b16 %v731, %v730
        %736 = vmatprep.subr.bf16.mxu0 0
        %737 = vmatpush1.bf16.msra.mxu0 %v732
        %738 = vmatprep.subr.bf16.mxu0 0
        %739 = vmatpush1.bf16.msra.mxu0 %v733
        %740 = vmatprep.subr.bf16.mxu0 0
        %741 = vmatpush1.bf16.msra.mxu0 0
        %742 = vmatprep.subr.bf16.mxu0 0
        %743 = vmatpush1.bf16.msra.mxu0 0
        %744 = vmatprep.subr.bf16.mxu0 0
        %745 = vmatpush1.bf16.msra.mxu0 0
        %746 = vmatprep.subr.bf16.mxu0 0
        %747 = vmatpush1.bf16.msra.mxu0 0
        %748 = vmatprep.subr.bf16.mxu0 0
        %749 = vmatpush1.bf16.msra.mxu0 0
        %750 = vmatprep.subr.bf16.mxu0 0
        %751 = vmatpush1.bf16.msra.mxu0 0
        %752 = vmatprep.subr.bf16.mxu0 0
        %753 = vmatpush1.bf16.msra.mxu0 0
        %754 = vmatprep.subr.bf16.mxu0 0
        %755 = vmatpush1.bf16.msra.mxu0 0
        %756 = vmatprep.subr.bf16.mxu0 0
        %757 = vmatpush1.bf16.msra.mxu0 0
        %758 = vmatprep.subr.bf16.mxu0 0
        %759 = vmatpush1.bf16.msra.mxu0 0
        %760 = vmatprep.subr.bf16.mxu0 0
        %761 = vmatpush1.bf16.msra.mxu0 0
        %762 = vmatprep.subr.bf16.mxu0 0
        %763 = vmatpush1.bf16.msra.mxu0 0
        %764 = vmatprep.subr.bf16.mxu0 0
        %765 = vmatpush1.bf16.msra.mxu0 0
        %766 = vmatprep.subr.bf16.mxu0 0
        %767 = vmatpush1.bf16.msra.mxu0 0
        %768 = vmatprep.mubr.bf16.mxu0 0
        %769 = vmatmul.mubr.bf16.gmra.mrb[0].mxu0 %v682
        %v770 = vpop.f32.mrb[0].mxu0
        %v771 = vadd.f32 0.0, %v770
        %v772 = vpop.f32.mrb[0].mxu0
        %v773 = vpop.f32.mrb[0].mxu0
        %v774 = vpop.f32.mrb[0].mxu0
        %775 = vdwg.mxu0
        %v780 = vunpack.c.l.b16 %v661
        %v781 = vunpack.c.l.b16 %v662
        %v782 = vunpack.c.l.b16 %v663
        %v783 = vunpack.c.l.b16 %v664
        %v784 = vpack.c.b16 %v781, %v780
        %v785 = vpack.c.b16 %v783, %v782
        %788 = vmatprep.subr.bf16.mxu0 0
        %789 = vmatpush1.bf16.msra.mxu0 %v784
        %790 = vmatprep.subr.bf16.mxu0 0
        %791 = vmatpush1.bf16.msra.mxu0 %v785
        %792 = vmatprep.subr.bf16.mxu0 0
        %793 = vmatpush1.bf16.msra.mxu0 0
        %794 = vmatprep.subr.bf16.mxu0 0
        %795 = vmatpush1.bf16.msra.mxu0 0
        %796 = vmatprep.subr.bf16.mxu0 0
        %797 = vmatpush1.bf16.msra.mxu0 0
        %798 = vmatprep.subr.bf16.mxu0 0
        %799 = vmatpush1.bf16.msra.mxu0 0
        %800 = vmatprep.subr.bf16.mxu0 0
        %801 = vmatpush1.bf16.msra.mxu0 0
        %802 = vmatprep.subr.bf16.mxu0 0
        %803 = vmatpush1.bf16.msra.mxu0 0
        %804 = vmatprep.subr.bf16.mxu0 0
        %805 = vmatpush1.bf16.msra.mxu0 0
        %806 = vmatprep.subr.bf16.mxu0 0
        %807 = vmatpush1.bf16.msra.mxu0 0
        %808 = vmatprep.subr.bf16.mxu0 0
        %809 = vmatpush1.bf16.msra.mxu0 0
        %810 = vmatprep.subr.bf16.mxu0 0
        %811 = vmatpush1.bf16.msra.mxu0 0
        %812 = vmatprep.subr.bf16.mxu0 0
        %813 = vmatpush1.bf16.msra.mxu0 0
        %814 = vmatprep.subr.bf16.mxu0 0
        %815 = vmatpush1.bf16.msra.mxu0 0
        %816 = vmatprep.subr.bf16.mxu0 0
        %817 = vmatpush1.bf16.msra.mxu0 0
        %818 = vmatprep.subr.bf16.mxu0 0
        %819 = vmatpush1.bf16.msra.mxu0 0
        %820 = vmatprep.mubr.bf16.mxu0 0
        %821 = vmatmul.mubr.bf16.gmra.mrb[0].mxu0 %v682
        %v822 = vpop.f32.mrb[0].mxu0
        %v823 = vadd.f32 0.0, %v822
        %v824 = vpop.f32.mrb[0].mxu0
        %v825 = vpop.f32.mrb[0].mxu0
        %v826 = vpop.f32.mrb[0].mxu0
        %827 = vdwg.mxu0
        %v832 = vunpack.c.l.b16 %v665
        %v833 = vunpack.c.l.b16 %v666
        %v834 = vunpack.c.l.b16 %v667
        %v835 = vunpack.c.l.b16 %v668
        %v836 = vpack.c.b16 %v833, %v832
        %v837 = vpack.c.b16 %v835, %v834
        %840 = vmatprep.subr.bf16.mxu0 0
        %841 = vmatpush1.bf16.msra.mxu0 %v836
        %842 = vmatprep.subr.bf16.mxu0 0
        %843 = vmatpush1.bf16.msra.mxu0 %v837
        %844 = vmatprep.subr.bf16.mxu0 0
        %845 = vmatpush1.bf16.msra.mxu0 0
        %846 = vmatprep.subr.bf16.mxu0 0
        %847 = vmatpush1.bf16.msra.mxu0 0
        %848 = vmatprep.subr.bf16.mxu0 0
        %849 = vmatpush1.bf16.msra.mxu0 0
        %850 = vmatprep.subr.bf16.mxu0 0
        %851 = vmatpush1.bf16.msra.mxu0 0
        %852 = vmatprep.subr.bf16.mxu0 0
        %853 = vmatpush1.bf16.msra.mxu0 0
        %854 = vmatprep.subr.bf16.mxu0 0
        %855 = vmatpush1.bf16.msra.mxu0 0
        %856 = vmatprep.subr.bf16.mxu0 0
        %857 = vmatpush1.bf16.msra.mxu0 0
        %858 = vmatprep.subr.bf16.mxu0 0
        %859 = vmatpush1.bf16.msra.mxu0 0
        %860 = vmatprep.subr.bf16.mxu0 0
        %861 = vmatpush1.bf16.msra.mxu0 0
        %862 = vmatprep.subr.bf16.mxu0 0
        %863 = vmatpush1.bf16.msra.mxu0 0
        %864 = vmatprep.subr.bf16.mxu0 0
        %865 = vmatpush1.bf16.msra.mxu0 0
        %866 = vmatprep.subr.bf16.mxu0 0
        %867 = vmatpush1.bf16.msra.mxu0 0
        %868 = vmatprep.subr.bf16.mxu0 0
        %869 = vmatpush1.bf16.msra.mxu0 0
        %870 = vmatprep.subr.bf16.mxu0 0
        %871 = vmatpush1.bf16.msra.mxu0 0
        %872 = vmatprep.mubr.bf16.mxu0 0
        %873 = vmatmul.mubr.bf16.gmra.mrb[0].mxu0 %v682
        %v874 = vpop.f32.mrb[0].mxu0
        %v875 = vadd.f32 0.0, %v874
        %v876 = vpop.f32.mrb[0].mxu0
        %v877 = vpop.f32.mrb[0].mxu0
        %v878 = vpop.f32.mrb[0].mxu0
        %879 = vdwg.mxu0
        %v880 = vpack.c.bf16 %v719, %v719
        %v881 = vpack.c.bf16 %v771, %v771
        %v882 = vpack.c.bf16 %v823, %v823
        %v883 = vpack.c.bf16 %v875, %v875
        %885 = vrot.lane.b32.xlu0 %v880, 120
        %v886 = vpop.permute.xlu0 %885
        %vm887 = vcmask 64512
        %v889 = vsel %vm887, %v880, 0
        %v892 = vsel %vm887, %v886, 0
        %894 = vmatprep.subr.bf16.mxu0 0
        %895 = vmatpush1.bf16.xpose.msra.mxu0 %v892
        %896 = vmatprep.subr.bf16.mxu0 0
        %897 = vmatpush1.bf16.xpose.msra.mxu0 0
        %898 = vmatprep.subr.bf16.mxu0 0
        %899 = vmatpush1.bf16.xpose.msra.mxu0 0
        %900 = vmatprep.subr.bf16.mxu0 0
        %901 = vmatpush1.bf16.xpose.msra.mxu0 0
        %902 = vmatprep.subr.bf16.mxu0 0
        %903 = vmatpush1.bf16.xpose.msra.mxu0 0
        %904 = vmatprep.subr.bf16.mxu0 0
        %905 = vmatpush1.bf16.xpose.msra.mxu0 0
        %906 = vmatprep.subr.bf16.mxu0 0
        %907 = vmatpush1.bf16.xpose.msra.mxu0 0
        %908 = vmatprep.subr.bf16.mxu0 0
        %909 = vmatpush1.bf16.xpose.msra.mxu0 0
        %910 = vmatprep.subr.bf16.mxu0 0
        %911 = vmatpush1.bf16.xpose.msra.mxu0 0
        %912 = vmatprep.subr.bf16.mxu0 0
        %913 = vmatpush1.bf16.xpose.msra.mxu0 0
        %914 = vmatprep.subr.bf16.mxu0 0
        %915 = vmatpush1.bf16.xpose.msra.mxu0 0
        %916 = vmatprep.subr.bf16.mxu0 0
        %917 = vmatpush1.bf16.xpose.msra.mxu0 0
        %918 = vmatprep.subr.bf16.mxu0 0
        %919 = vmatpush1.bf16.xpose.msra.mxu0 0
        %920 = vmatprep.subr.bf16.mxu0 0
        %921 = vmatpush1.bf16.xpose.msra.mxu0 0
        %922 = vmatprep.subr.bf16.mxu0 0
        %923 = vmatpush1.bf16.xpose.msra.mxu0 0
        %924 = vmatprep.subr.bf16.mxu0 0
        %925 = vmatpush1.bf16.xpose.msra.mxu0 0
        %926 = vmatprep.mubr.bf16.mxu0 0
        %927 = vmatmul.mubr.bf16.gmra.mrb[0].mxu0 %v889
        %v928 = vpop.f32.mrb[0].mxu0
        %v929 = vadd.f32 0.0, %v928
        %v930 = vpop.f32.mrb[0].mxu0
        %v931 = vpop.f32.mrb[0].mxu0
        %v932 = vpop.f32.mrb[0].mxu0
        %933 = vdwg.mxu0
        %935 = vrot.lane.b32.xlu0 %v881, 120
        %v936 = vpop.permute.xlu0 %935
        %v938 = vsel %vm887, %v881, 0
        %v941 = vsel %vm887, %v936, 0
        %943 = vmatprep.subr.bf16.mxu0 0
        %944 = vmatpush1.bf16.xpose.msra.mxu0 %v941
        %945 = vmatprep.subr.bf16.mxu0 0
        %946 = vmatpush1.bf16.xpose.msra.mxu0 0
        %947 = vmatprep.subr.bf16.mxu0 0
        %948 = vmatpush1.bf16.xpose.msra.mxu0 0
        %949 = vmatprep.subr.bf16.mxu0 0
        %950 = vmatpush1.bf16.xpose.msra.mxu0 0
        %951 = vmatprep.subr.bf16.mxu0 0
        %952 = vmatpush1.bf16.xpose.msra.mxu0 0
        %953 = vmatprep.subr.bf16.mxu0 0
        %954 = vmatpush1.bf16.xpose.msra.mxu0 0
        %955 = vmatprep.subr.bf16.mxu0 0
        %956 = vmatpush1.bf16.xpose.msra.mxu0 0
        %957 = vmatprep.subr.bf16.mxu0 0
        %958 = vmatpush1.bf16.xpose.msra.mxu0 0
        %959 = vmatprep.subr.bf16.mxu0 0
        %960 = vmatpush1.bf16.xpose.msra.mxu0 0
        %961 = vmatprep.subr.bf16.mxu0 0
        %962 = vmatpush1.bf16.xpose.msra.mxu0 0
        %963 = vmatprep.subr.bf16.mxu0 0
        %964 = vmatpush1.bf16.xpose.msra.mxu0 0
        %965 = vmatprep.subr.bf16.mxu0 0
        %966 = vmatpush1.bf16.xpose.msra.mxu0 0
        %967 = vmatprep.subr.bf16.mxu0 0
        %968 = vmatpush1.bf16.xpose.msra.mxu0 0
        %969 = vmatprep.subr.bf16.mxu0 0
        %970 = vmatpush1.bf16.xpose.msra.mxu0 0
        %971 = vmatprep.subr.bf16.mxu0 0
        %972 = vmatpush1.bf16.xpose.msra.mxu0 0
        %973 = vmatprep.subr.bf16.mxu0 0
        %974 = vmatpush1.bf16.xpose.msra.mxu0 0
        %975 = vmatprep.mubr.bf16.mxu0 0
        %976 = vmatmul.mubr.bf16.gmra.mrb[0].mxu0 %v938
        %v977 = vpop.f32.mrb[0].mxu0
        %v978 = vadd.f32 0.0, %v977
        %v979 = vpop.f32.mrb[0].mxu0
        %v980 = vpop.f32.mrb[0].mxu0
        %v981 = vpop.f32.mrb[0].mxu0
        %982 = vdwg.mxu0
        %984 = vrot.lane.b32.xlu0 %v882, 120
        %v985 = vpop.permute.xlu0 %984
        %v987 = vsel %vm887, %v882, 0
        %v990 = vsel %vm887, %v985, 0
        %992 = vmatprep.subr.bf16.mxu0 0
        %993 = vmatpush1.bf16.xpose.msra.mxu0 %v990
        %994 = vmatprep.subr.bf16.mxu0 0
        %995 = vmatpush1.bf16.xpose.msra.mxu0 0
        %996 = vmatprep.subr.bf16.mxu0 0
        %997 = vmatpush1.bf16.xpose.msra.mxu0 0
        %998 = vmatprep.subr.bf16.mxu0 0
        %999 = vmatpush1.bf16.xpose.msra.mxu0 0
        %1000 = vmatprep.subr.bf16.mxu0 0
        %1001 = vmatpush1.bf16.xpose.msra.mxu0 0
        %1002 = vmatprep.subr.bf16.mxu0 0
        %1003 = vmatpush1.bf16.xpose.msra.mxu0 0
        %1004 = vmatprep.subr.bf16.mxu0 0
        %1005 = vmatpush1.bf16.xpose.msra.mxu0 0
        %1006 = vmatprep.subr.bf16.mxu0 0
        %1007 = vmatpush1.bf16.xpose.msra.mxu0 0
        %1008 = vmatprep.subr.bf16.mxu0 0
        %1009 = vmatpush1.bf16.xpose.msra.mxu0 0
        %1010 = vmatprep.subr.bf16.mxu0 0
        %1011 = vmatpush1.bf16.xpose.msra.mxu0 0
        %1012 = vmatprep.subr.bf16.mxu0 0
        %1013 = vmatpush1.bf16.xpose.msra.mxu0 0
        %1014 = vmatprep.subr.bf16.mxu0 0
        %1015 = vmatpush1.bf16.xpose.msra.mxu0 0
        %1016 = vmatprep.subr.bf16.mxu0 0
        %1017 = vmatpush1.bf16.xpose.msra.mxu0 0
        %1018 = vmatprep.subr.bf16.mxu0 0
        %1019 = vmatpush1.bf16.xpose.msra.mxu0 0
        %1020 = vmatprep.subr.bf16.mxu0 0
        %1021 = vmatpush1.bf16.xpose.msra.mxu0 0
        %1022 = vmatprep.subr.bf16.mxu0 0
        %1023 = vmatpush1.bf16.xpose.msra.mxu0 0
        %1024 = vmatprep.mubr.bf16.mxu0 0
        %1025 = vmatmul.mubr.bf16.gmra.mrb[0].mxu0 %v987
        %v1026 = vpop.f32.mrb[0].mxu0
        %v1027 = vadd.f32 0.0, %v1026
        %v1028 = vpop.f32.mrb[0].mxu0
        %v1029 = vpop.f32.mrb[0].mxu0
        %v1030 = vpop.f32.mrb[0].mxu0
        %1031 = vdwg.mxu0
        %1033 = vrot.lane.b32.xlu0 %v883, 120
        %v1034 = vpop.permute.xlu0 %1033
        %v1036 = vsel %vm887, %v883, 0
        %v1039 = vsel %vm887, %v1034, 0
        %1041 = vmatprep.subr.bf16.mxu0 0
        %1042 = vmatpush1.bf16.xpose.msra.mxu0 %v1039
        %1043 = vmatprep.subr.bf16.mxu0 0
        %1044 = vmatpush1.bf16.xpose.msra.mxu0 0
        %1045 = vmatprep.subr.bf16.mxu0 0
        %1046 = vmatpush1.bf16.xpose.msra.mxu0 0
        %1047 = vmatprep.subr.bf16.mxu0 0
        %1048 = vmatpush1.bf16.xpose.msra.mxu0 0
        %1049 = vmatprep.subr.bf16.mxu0 0
        %1050 = vmatpush1.bf16.xpose.msra.mxu0 0
        %1051 = vmatprep.subr.bf16.mxu0 0
        %1052 = vmatpush1.bf16.xpose.msra.mxu0 0
        %1053 = vmatprep.subr.bf16.mxu0 0
        %1054 = vmatpush1.bf16.xpose.msra.mxu0 0
        %1055 = vmatprep.subr.bf16.mxu0 0
        %1056 = vmatpush1.bf16.xpose.msra.mxu0 0
        %1057 = vmatprep.subr.bf16.mxu0 0
        %1058 = vmatpush1.bf16.xpose.msra.mxu0 0
        %1059 = vmatprep.subr.bf16.mxu0 0
        %1060 = vmatpush1.bf16.xpose.msra.mxu0 0
        %1061 = vmatprep.subr.bf16.mxu0 0
        %1062 = vmatpush1.bf16.xpose.msra.mxu0 0
        %1063 = vmatprep.subr.bf16.mxu0 0
        %1064 = vmatpush1.bf16.xpose.msra.mxu0 0
        %1065 = vmatprep.subr.bf16.mxu0 0
        %1066 = vmatpush1.bf16.xpose.msra.mxu0 0
        %1067 = vmatprep.subr.bf16.mxu0 0
        %1068 = vmatpush1.bf16.xpose.msra.mxu0 0
        %1069 = vmatprep.subr.bf16.mxu0 0
        %1070 = vmatpush1.bf16.xpose.msra.mxu0 0
        %1071 = vmatprep.subr.bf16.mxu0 0
        %1072 = vmatpush1.bf16.xpose.msra.mxu0 0
        %1073 = vmatprep.mubr.bf16.mxu0 0
        %1074 = vmatmul.mubr.bf16.gmra.mrb[0].mxu0 %v1036
        %v1075 = vpop.f32.mrb[0].mxu0
        %v1076 = vadd.f32 0.0, %v1075
        %v1077 = vpop.f32.mrb[0].mxu0
        %v1078 = vpop.f32.mrb[0].mxu0
        %v1079 = vpop.f32.mrb[0].mxu0
        %1080 = vdwg.mxu0
        %v1081 = vsel %vm887, %v929, -inf
        %1082 = vmax.xlane.f32.xlu0 %v1081
        %v1083 = vpop.xlane.xlu0 %1082
        %v1084 = vsel %vm887, %v978, -inf
        %1085 = vmax.xlane.f32.xlu0 %v1084
        %v1086 = vpop.xlane.xlu0 %1085
        %v1087 = vsel %vm887, %v1027, -inf
        %1088 = vmax.xlane.f32.xlu0 %v1087
        %v1089 = vpop.xlane.xlu0 %1088
        %v1090 = vsel %vm887, %v1076, -inf
        %1091 = vmax.xlane.f32.xlu0 %v1090
        %v1092 = vpop.xlane.xlu0 %1091
        %v1093 = vsub.f32 %v929, %v1083
        %v1094 = vsub.f32 %v978, %v1086
        %v1095 = vsub.f32 %v1027, %v1089
        %v1096 = vsub.f32 %v1076, %v1092
        %v1097 = vmul.f32 %v1093, 1.442695
        %v1098 = vpow.pop %v1097
        %v1099 = vmul.f32 %v1094, 1.442695
        %v1100 = vpow.pop %v1099
        %v1101 = vmul.f32 %v1095, 1.442695
        %v1102 = vpow.pop %v1101
        %v1103 = vmul.f32 %v1096, 1.442695
        %v1104 = vpow.pop %v1103
        %v1105 = vsel %vm887, %v1098, 0.0
        %1106 = vadd.xlane.f32.xlu0 %v1105
        %v1107 = vpop.xlane.xlu0 %1106
        %v1108 = vsel %vm887, %v1100, 0.0
        %1109 = vadd.xlane.f32.xlu0 %v1108
        %v1110 = vpop.xlane.xlu0 %1109
        %v1111 = vsel %vm887, %v1102, 0.0
        %1112 = vadd.xlane.f32.xlu0 %v1111
        %v1113 = vpop.xlane.xlu0 %1112
        %v1114 = vsel %vm887, %v1104, 0.0
        %1115 = vadd.xlane.f32.xlu0 %v1114
        %v1116 = vpop.xlane.xlu0 %1115
        %v1117 = vpack.c.bf16 %v1098, %v1098
        %v1118 = vpack.c.bf16 %v1100, %v1100
        %v1119 = vpack.c.bf16 %v1102, %v1102
        %v1120 = vpack.c.bf16 %v1104, %v1104
        %1121 = vrot.lane.b32.xlu0 %v880, 112
        %v1122 = vpop.permute.xlu0 %1121
        %v1124 = vsel %vm887, %v1117, 0
        %vm1126 = vcmask 1043456
        %v1128 = vsel %vm1126, %v1122, 0
        %1130 = vmatprep.subr.bf16.mxu0 0
        %1131 = vmatpush1.bf16.msra.mxu0 %v1128
        %1132 = vmatprep.subr.bf16.mxu0 0
        %1133 = vmatpush1.bf16.msra.mxu0 0
        %1134 = vmatprep.subr.bf16.mxu0 0
        %1135 = vmatpush1.bf16.msra.mxu0 0
        %1136 = vmatprep.subr.bf16.mxu0 0
        %1137 = vmatpush1.bf16.msra.mxu0 0
        %1138 = vmatprep.subr.bf16.mxu0 0
        %1139 = vmatpush1.bf16.msra.mxu0 0
        %1140 = vmatprep.subr.bf16.mxu0 0
        %1141 = vmatpush1.bf16.msra.mxu0 0
        %1142 = vmatprep.subr.bf16.mxu0 0
        %1143 = vmatpush1.bf16.msra.mxu0 0
        %1144 = vmatprep.subr.bf16.mxu0 0
        %1145 = vmatpush1.bf16.msra.mxu0 0
        %1146 = vmatprep.subr.bf16.mxu0 0
        %1147 = vmatpush1.bf16.msra.mxu0 0
        %1148 = vmatprep.subr.bf16.mxu0 0
        %1149 = vmatpush1.bf16.msra.mxu0 0
        %1150 = vmatprep.subr.bf16.mxu0 0
        %1151 = vmatpush1.bf16.msra.mxu0 0
        %1152 = vmatprep.subr.bf16.mxu0 0
        %1153 = vmatpush1.bf16.msra.mxu0 0
        %1154 = vmatprep.subr.bf16.mxu0 0
        %1155 = vmatpush1.bf16.msra.mxu0 0
        %1156 = vmatprep.subr.bf16.mxu0 0
        %1157 = vmatpush1.bf16.msra.mxu0 0
        %1158 = vmatprep.subr.bf16.mxu0 0
        %1159 = vmatpush1.bf16.msra.mxu0 0
        %1160 = vmatprep.subr.bf16.mxu0 0
        %1161 = vmatpush1.bf16.msra.mxu0 0
        %1162 = vmatprep.mubr.bf16.mxu0 0
        %1163 = vmatmul.mubr.bf16.gmra.mrb[0].mxu0 %v1124
        %v1164 = vpop.f32.mrb[0].mxu0
        %v1165 = vadd.f32 0.0, %v1164
        %v1166 = vpop.f32.mrb[0].mxu0
        %v1167 = vpop.f32.mrb[0].mxu0
        %v1168 = vpop.f32.mrb[0].mxu0
        %1169 = vdwg.mxu0
        %1170 = vrot.lane.b32.xlu0 %v881, 112
        %v1171 = vpop.permute.xlu0 %1170
        %v1173 = vsel %vm887, %v1118, 0
        %v1176 = vsel %vm1126, %v1171, 0
        %1178 = vmatprep.subr.bf16.mxu0 0
        %1179 = vmatpush1.bf16.msra.mxu0 %v1176
        %1180 = vmatprep.subr.bf16.mxu0 0
        %1181 = vmatpush1.bf16.msra.mxu0 0
        %1182 = vmatprep.subr.bf16.mxu0 0
        %1183 = vmatpush1.bf16.msra.mxu0 0
        %1184 = vmatprep.subr.bf16.mxu0 0
        %1185 = vmatpush1.bf16.msra.mxu0 0
        %1186 = vmatprep.subr.bf16.mxu0 0
        %1187 = vmatpush1.bf16.msra.mxu0 0
        %1188 = vmatprep.subr.bf16.mxu0 0
        %1189 = vmatpush1.bf16.msra.mxu0 0
        %1190 = vmatprep.subr.bf16.mxu0 0
        %1191 = vmatpush1.bf16.msra.mxu0 0
        %1192 = vmatprep.subr.bf16.mxu0 0
        %1193 = vmatpush1.bf16.msra.mxu0 0
        %1194 = vmatprep.subr.bf16.mxu0 0
        %1195 = vmatpush1.bf16.msra.mxu0 0
        %1196 = vmatprep.subr.bf16.mxu0 0
        %1197 = vmatpush1.bf16.msra.mxu0 0
        %1198 = vmatprep.subr.bf16.mxu0 0
        %1199 = vmatpush1.bf16.msra.mxu0 0
        %1200 = vmatprep.subr.bf16.mxu0 0
        %1201 = vmatpush1.bf16.msra.mxu0 0
        %1202 = vmatprep.subr.bf16.mxu0 0
        %1203 = vmatpush1.bf16.msra.mxu0 0
        %1204 = vmatprep.subr.bf16.mxu0 0
        %1205 = vmatpush1.bf16.msra.mxu0 0
        %1206 = vmatprep.subr.bf16.mxu0 0
        %1207 = vmatpush1.bf16.msra.mxu0 0
        %1208 = vmatprep.subr.bf16.mxu0 0
        %1209 = vmatpush1.bf16.msra.mxu0 0
        %1210 = vmatprep.mubr.bf16.mxu0 0
        %1211 = vmatmul.mubr.bf16.gmra.mrb[0].mxu0 %v1173
        %v1212 = vpop.f32.mrb[0].mxu0
        %v1213 = vadd.f32 0.0, %v1212
        %v1214 = vpop.f32.mrb[0].mxu0
        %v1215 = vpop.f32.mrb[0].mxu0
        %v1216 = vpop.f32.mrb[0].mxu0
        %1217 = vdwg.mxu0
        %1218 = vrot.lane.b32.xlu0 %v882, 112
        %v1219 = vpop.permute.xlu0 %1218
        %v1221 = vsel %vm887, %v1119, 0
        %v1224 = vsel %vm1126, %v1219, 0
        %1226 = vmatprep.subr.bf16.mxu0 0
        %1227 = vmatpush1.bf16.msra.mxu0 %v1224
        %1228 = vmatprep.subr.bf16.mxu0 0
        %1229 = vmatpush1.bf16.msra.mxu0 0
        %1230 = vmatprep.subr.bf16.mxu0 0
        %1231 = vmatpush1.bf16.msra.mxu0 0
        %1232 = vmatprep.subr.bf16.mxu0 0
        %1233 = vmatpush1.bf16.msra.mxu0 0
        %1234 = vmatprep.subr.bf16.mxu0 0
        %1235 = vmatpush1.bf16.msra.mxu0 0
        %1236 = vmatprep.subr.bf16.mxu0 0
        %1237 = vmatpush1.bf16.msra.mxu0 0
        %1238 = vmatprep.subr.bf16.mxu0 0
        %1239 = vmatpush1.bf16.msra.mxu0 0
        %1240 = vmatprep.subr.bf16.mxu0 0
        %1241 = vmatpush1.bf16.msra.mxu0 0
        %1242 = vmatprep.subr.bf16.mxu0 0
        %1243 = vmatpush1.bf16.msra.mxu0 0
        %1244 = vmatprep.subr.bf16.mxu0 0
        %1245 = vmatpush1.bf16.msra.mxu0 0
        %1246 = vmatprep.subr.bf16.mxu0 0
        %1247 = vmatpush1.bf16.msra.mxu0 0
        %1248 = vmatprep.subr.bf16.mxu0 0
        %1249 = vmatpush1.bf16.msra.mxu0 0
        %1250 = vmatprep.subr.bf16.mxu0 0
        %1251 = vmatpush1.bf16.msra.mxu0 0
        %1252 = vmatprep.subr.bf16.mxu0 0
        %1253 = vmatpush1.bf16.msra.mxu0 0
        %1254 = vmatprep.subr.bf16.mxu0 0
        %1255 = vmatpush1.bf16.msra.mxu0 0
        %1256 = vmatprep.subr.bf16.mxu0 0
        %1257 = vmatpush1.bf16.msra.mxu0 0
        %1258 = vmatprep.mubr.bf16.mxu0 0
        %1259 = vmatmul.mubr.bf16.gmra.mrb[0].mxu0 %v1221
        %v1260 = vpop.f32.mrb[0].mxu0
        %v1261 = vadd.f32 0.0, %v1260
        %v1262 = vpop.f32.mrb[0].mxu0
        %v1263 = vpop.f32.mrb[0].mxu0
        %v1264 = vpop.f32.mrb[0].mxu0
        %1265 = vdwg.mxu0
        %1266 = vrot.lane.b32.xlu0 %v883, 112
        %v1267 = vpop.permute.xlu0 %1266
        %v1269 = vsel %vm887, %v1120, 0
        %v1272 = vsel %vm1126, %v1267, 0
        %1274 = vmatprep.subr.bf16.mxu0 0
        %1275 = vmatpush1.bf16.msra.mxu0 %v1272
        %1276 = vmatprep.subr.bf16.mxu0 0
        %1277 = vmatpush1.bf16.msra.mxu0 0
        %1278 = vmatprep.subr.bf16.mxu0 0
        %1279 = vmatpush1.bf16.msra.mxu0 0
        %1280 = vmatprep.subr.bf16.mxu0 0
        %1281 = vmatpush1.bf16.msra.mxu0 0
        %1282 = vmatprep.subr.bf16.mxu0 0
        %1283 = vmatpush1.bf16.msra.mxu0 0
        %1284 = vmatprep.subr.bf16.mxu0 0
        %1285 = vmatpush1.bf16.msra.mxu0 0
        %1286 = vmatprep.subr.bf16.mxu0 0
        %1287 = vmatpush1.bf16.msra.mxu0 0
        %1288 = vmatprep.subr.bf16.mxu0 0
        %1289 = vmatpush1.bf16.msra.mxu0 0
        %1290 = vmatprep.subr.bf16.mxu0 0
        %1291 = vmatpush1.bf16.msra.mxu0 0
        %1292 = vmatprep.subr.bf16.mxu0 0
        %1293 = vmatpush1.bf16.msra.mxu0 0
        %1294 = vmatprep.subr.bf16.mxu0 0
        %1295 = vmatpush1.bf16.msra.mxu0 0
        %1296 = vmatprep.subr.bf16.mxu0 0
        %1297 = vmatpush1.bf16.msra.mxu0 0
        %1298 = vmatprep.subr.bf16.mxu0 0
        %1299 = vmatpush1.bf16.msra.mxu0 0
        %1300 = vmatprep.subr.bf16.mxu0 0
        %1301 = vmatpush1.bf16.msra.mxu0 0
        %1302 = vmatprep.subr.bf16.mxu0 0
        %1303 = vmatpush1.bf16.msra.mxu0 0
        %1304 = vmatprep.subr.bf16.mxu0 0
        %1305 = vmatpush1.bf16.msra.mxu0 0
        %1306 = vmatprep.mubr.bf16.mxu0 0
        %1307 = vmatmul.mubr.bf16.gmra.mrb[0].mxu0 %v1269
        %v1308 = vpop.f32.mrb[0].mxu0
        %v1309 = vadd.f32 0.0, %v1308
        %v1310 = vpop.f32.mrb[0].mxu0
        %v1311 = vpop.f32.mrb[0].mxu0
        %v1312 = vpop.f32.mrb[0].mxu0
        %1313 = vdwg.mxu0
        %v1314 = vrcp.pop %v1107
        %v1315 = vrcp.pop %v1110
        %v1316 = vrcp.pop %v1113
        %v1317 = vrcp.pop %v1116
        %v1318 = vmul.f32 %v1165, %v1314
        %v1319 = vmul.f32 %v1213, %v1315
        %v1320 = vmul.f32 %v1261, %v1316
        %v1321 = vmul.f32 %v1309, %v1317
        %v1322 = vpack.c.bf16 %v1318, %v1318
        %v1323 = vpack.c.bf16 %v1319, %v1319
        %v1324 = vpack.c.bf16 %v1320, %v1320
        %v1325 = vpack.c.bf16 %v1321, %v1321
        %v1326 = vld [vmem:[%s589] sm:$0xf]
        %v1327 = vld [vmem:[%s589 + $0x4] sm:$0xf]
        %v1328 = vld [vmem:[%s589 + $0x8] sm:$0xf]
        %v1329 = vld [vmem:[%s589 + $0xc] sm:$0xf]
        %v1331 = vsel %vm887, %v1322, 0
        %v1334 = vsel %vm1126, %v1326, 0
        %1336 = vmatprep.subr.bf16.mxu0 0
        %1337 = vmatpush1.bf16.msra.mxu0 %v1334
        %1338 = vmatprep.subr.bf16.mxu0 0
        %1339 = vmatpush1.bf16.msra.mxu0 0
        %1340 = vmatprep.subr.bf16.mxu0 0
        %1341 = vmatpush1.bf16.msra.mxu0 0
        %1342 = vmatprep.subr.bf16.mxu0 0
        %1343 = vmatpush1.bf16.msra.mxu0 0
        %1344 = vmatprep.subr.bf16.mxu0 0
        %1345 = vmatpush1.bf16.msra.mxu0 0
        %1346 = vmatprep.subr.bf16.mxu0 0
        %1347 = vmatpush1.bf16.msra.mxu0 0
        %1348 = vmatprep.subr.bf16.mxu0 0
        %1349 = vmatpush1.bf16.msra.mxu0 0
        %1350 = vmatprep.subr.bf16.mxu0 0
        %1351 = vmatpush1.bf16.msra.mxu0 0
        %1352 = vmatprep.subr.bf16.mxu0 0
        %1353 = vmatpush1.bf16.msra.mxu0 0
        %1354 = vmatprep.subr.bf16.mxu0 0
        %1355 = vmatpush1.bf16.msra.mxu0 0
        %1356 = vmatprep.subr.bf16.mxu0 0
        %1357 = vmatpush1.bf16.msra.mxu0 0
        %1358 = vmatprep.subr.bf16.mxu0 0
        %1359 = vmatpush1.bf16.msra.mxu0 0
        %1360 = vmatprep.subr.bf16.mxu0 0
        %1361 = vmatpush1.bf16.msra.mxu0 0
        %1362 = vmatprep.subr.bf16.mxu0 0
        %1363 = vmatpush1.bf16.msra.mxu0 0
        %1364 = vmatprep.subr.bf16.mxu0 0
        %1365 = vmatpush1.bf16.msra.mxu0 0
        %1366 = vmatprep.subr.bf16.mxu0 0
        %1367 = vmatpush1.bf16.msra.mxu0 0
        %1368 = vmatprep.mubr.bf16.mxu0 0
        %1369 = vmatmul.mubr.bf16.gmra.mrb[0].mxu0 %v1331
        %v1370 = vpop.f32.mrb[0].mxu0
        %v1371 = vadd.f32 0.0, %v1370
        %v1372 = vpop.f32.mrb[0].mxu0
        %v1373 = vpop.f32.mrb[0].mxu0
        %v1374 = vpop.f32.mrb[0].mxu0
        %1375 = vdwg.mxu0
        %v1377 = vsel %vm887, %v1323, 0
        %v1380 = vsel %vm1126, %v1327, 0
        %1382 = vmatprep.subr.bf16.mxu0 0
        %1383 = vmatpush1.bf16.msra.mxu0 %v1380
        %1384 = vmatprep.subr.bf16.mxu0 0
        %1385 = vmatpush1.bf16.msra.mxu0 0
        %1386 = vmatprep.subr.bf16.mxu0 0
        %1387 = vmatpush1.bf16.msra.mxu0 0
        %1388 = vmatprep.subr.bf16.mxu0 0
        %1389 = vmatpush1.bf16.msra.mxu0 0
        %1390 = vmatprep.subr.bf16.mxu0 0
        %1391 = vmatpush1.bf16.msra.mxu0 0
        %1392 = vmatprep.subr.bf16.mxu0 0
        %1393 = vmatpush1.bf16.msra.mxu0 0
        %1394 = vmatprep.subr.bf16.mxu0 0
        %1395 = vmatpush1.bf16.msra.mxu0 0
        %1396 = vmatprep.subr.bf16.mxu0 0
        %1397 = vmatpush1.bf16.msra.mxu0 0
        %1398 = vmatprep.subr.bf16.mxu0 0
        %1399 = vmatpush1.bf16.msra.mxu0 0
        %1400 = vmatprep.subr.bf16.mxu0 0
        %1401 = vmatpush1.bf16.msra.mxu0 0
        %1402 = vmatprep.subr.bf16.mxu0 0
        %1403 = vmatpush1.bf16.msra.mxu0 0
        %1404 = vmatprep.subr.bf16.mxu0 0
        %1405 = vmatpush1.bf16.msra.mxu0 0
        %1406 = vmatprep.subr.bf16.mxu0 0
        %1407 = vmatpush1.bf16.msra.mxu0 0
        %1408 = vmatprep.subr.bf16.mxu0 0
        %1409 = vmatpush1.bf16.msra.mxu0 0
        %1410 = vmatprep.subr.bf16.mxu0 0
        %1411 = vmatpush1.bf16.msra.mxu0 0
        %1412 = vmatprep.subr.bf16.mxu0 0
        %1413 = vmatpush1.bf16.msra.mxu0 0
        %1414 = vmatprep.mubr.bf16.mxu0 0
        %1415 = vmatmul.mubr.bf16.gmra.mrb[0].mxu0 %v1377
        %v1416 = vpop.f32.mrb[0].mxu0
        %v1417 = vadd.f32 0.0, %v1416
        %v1418 = vpop.f32.mrb[0].mxu0
        %v1419 = vpop.f32.mrb[0].mxu0
        %v1420 = vpop.f32.mrb[0].mxu0
        %1421 = vdwg.mxu0
        %v1423 = vsel %vm887, %v1324, 0
        %v1426 = vsel %vm1126, %v1328, 0
        %1428 = vmatprep.subr.bf16.mxu0 0
        %1429 = vmatpush1.bf16.msra.mxu0 %v1426
        %1430 = vmatprep.subr.bf16.mxu0 0
        %1431 = vmatpush1.bf16.msra.mxu0 0
        %1432 = vmatprep.subr.bf16.mxu0 0
        %1433 = vmatpush1.bf16.msra.mxu0 0
        %1434 = vmatprep.subr.bf16.mxu0 0
        %1435 = vmatpush1.bf16.msra.mxu0 0
        %1436 = vmatprep.subr.bf16.mxu0 0
        %1437 = vmatpush1.bf16.msra.mxu0 0
        %1438 = vmatprep.subr.bf16.mxu0 0
        %1439 = vmatpush1.bf16.msra.mxu0 0
        %1440 = vmatprep.subr.bf16.mxu0 0
        %1441 = vmatpush1.bf16.msra.mxu0 0
        %1442 = vmatprep.subr.bf16.mxu0 0
        %1443 = vmatpush1.bf16.msra.mxu0 0
        %1444 = vmatprep.subr.bf16.mxu0 0
        %1445 = vmatpush1.bf16.msra.mxu0 0
        %1446 = vmatprep.subr.bf16.mxu0 0
        %1447 = vmatpush1.bf16.msra.mxu0 0
        %1448 = vmatprep.subr.bf16.mxu0 0
        %1449 = vmatpush1.bf16.msra.mxu0 0
        %1450 = vmatprep.subr.bf16.mxu0 0
        %1451 = vmatpush1.bf16.msra.mxu0 0
        %1452 = vmatprep.subr.bf16.mxu0 0
        %1453 = vmatpush1.bf16.msra.mxu0 0
        %1454 = vmatprep.subr.bf16.mxu0 0
        %1455 = vmatpush1.bf16.msra.mxu0 0
        %1456 = vmatprep.subr.bf16.mxu0 0
        %1457 = vmatpush1.bf16.msra.mxu0 0
        %1458 = vmatprep.subr.bf16.mxu0 0
        %1459 = vmatpush1.bf16.msra.mxu0 0
        %1460 = vmatprep.mubr.bf16.mxu0 0
        %1461 = vmatmul.mubr.bf16.gmra.mrb[0].mxu0 %v1423
        %v1462 = vpop.f32.mrb[0].mxu0
        %v1463 = vadd.f32 0.0, %v1462
        %v1464 = vpop.f32.mrb[0].mxu0
        %v1465 = vpop.f32.mrb[0].mxu0
        %v1466 = vpop.f32.mrb[0].mxu0
        %1467 = vdwg.mxu0
        %v1469 = vsel %vm887, %v1325, 0
        %v1472 = vsel %vm1126, %v1329, 0
        %1474 = vmatprep.subr.bf16.mxu0 0
        %1475 = vmatpush1.bf16.msra.mxu0 %v1472
        %1476 = vmatprep.subr.bf16.mxu0 0
        %1477 = vmatpush1.bf16.msra.mxu0 0
        %1478 = vmatprep.subr.bf16.mxu0 0
        %1479 = vmatpush1.bf16.msra.mxu0 0
        %1480 = vmatprep.subr.bf16.mxu0 0
        %1481 = vmatpush1.bf16.msra.mxu0 0
        %1482 = vmatprep.subr.bf16.mxu0 0
        %1483 = vmatpush1.bf16.msra.mxu0 0
        %1484 = vmatprep.subr.bf16.mxu0 0
        %1485 = vmatpush1.bf16.msra.mxu0 0
        %1486 = vmatprep.subr.bf16.mxu0 0
        %1487 = vmatpush1.bf16.msra.mxu0 0
        %1488 = vmatprep.subr.bf16.mxu0 0
        %1489 = vmatpush1.bf16.msra.mxu0 0
        %1490 = vmatprep.subr.bf16.mxu0 0
        %1491 = vmatpush1.bf16.msra.mxu0 0
        %1492 = vmatprep.subr.bf16.mxu0 0
        %1493 = vmatpush1.bf16.msra.mxu0 0
        %1494 = vmatprep.subr.bf16.mxu0 0
        %1495 = vmatpush1.bf16.msra.mxu0 0
        %1496 = vmatprep.subr.bf16.mxu0 0
        %1497 = vmatpush1.bf16.msra.mxu0 0
        %1498 = vmatprep.subr.bf16.mxu0 0
        %1499 = vmatpush1.bf16.msra.mxu0 0
        %1500 = vmatprep.subr.bf16.mxu0 0
        %1501 = vmatpush1.bf16.msra.mxu0 0
        %1502 = vmatprep.subr.bf16.mxu0 0
        %1503 = vmatpush1.bf16.msra.mxu0 0
        %1504 = vmatprep.subr.bf16.mxu0 0
        %1505 = vmatpush1.bf16.msra.mxu0 0
        %1506 = vmatprep.mubr.bf16.mxu0 0
        %1507 = vmatmul.mubr.bf16.gmra.mrb[0].mxu0 %v1469
        %v1508 = vpop.f32.mrb[0].mxu0
        %v1509 = vadd.f32 0.0, %v1508
        %v1510 = vpop.f32.mrb[0].mxu0
        %v1511 = vpop.f32.mrb[0].mxu0
        %v1512 = vpop.f32.mrb[0].mxu0
        %1513 = vdwg.mxu0
        %v1514 = vsel %vm623, %v1371, 0.0
        %v1515 = vsel %vm623, %v1417, 0.0
        %v1516 = vadd.f32 %v1514, %v1515
        %v1517 = vsel %vm623, %v1463, 0.0
        %v1518 = vadd.f32 %v1516, %v1517
        %v1519 = vsel %vm623, %v1509, 0.0
        %v1520 = vadd.f32 %v1518, %v1519
        %v1521 = vadd.f32 %v1520, %v620
        %v1522 = vld [vmem:[%s592] sm:$0x1]
        %v1523 = vld [vmem:[%s595] sm:$0x1]
        %v1524 = vsel %vm623, %v1521, 0.0
        %1525 = vadd.xlane.f32.xlu0 %v1524
        %v1526 = vpop.xlane.xlu0 %1525
        %v1527 = vmul.f32 %v1526, %v627
        %v1528 = vsub.f32 %v1521, %v1527
        %v1529 = vmul.f32 %v1528, %v1528
        %v1530 = vsel %vm623, %v1529, 0.0
        %1531 = vadd.xlane.f32.xlu0 %v1530
        %v1532 = vpop.xlane.xlu0 %1531
        %v1533 = vmul.f32 %v1532, %v627
        %v1534 = vadd.f32 %v1533, 1e-05
        %v1535 = vrsqrt.pop %v1534
        %v1536 = vmul.f32 %v1528, %v1535
        %v1538 = vlaneseq
        %v1539 = vshrl.u32 %v1538, 7
        %v1540 = vsub.s32 0, %v1539
        %v1541 = vrot.slane %v1522, %v1540
        %v1543 = vmul.f32 %v1536, %v1541
        %v1545 = vlaneseq
        %v1546 = vshrl.u32 %v1545, 7
        %v1547 = vsub.s32 0, %v1546
        %v1548 = vrot.slane %v1523, %v1547
        %v1550 = vadd.f32 %v1543, %v1548
        %v1551 = vpack.c.bf16 %v1550, %v1550
        %v1552 = vld [vmem:[%s600] sm:$0xf]
        %v1553 = vld [vmem:[%s600 + $0x4] sm:$0xf]
        %v1554 = vld [vmem:[%s600 + $0x8] sm:$0xf]
        %v1555 = vld [vmem:[%s600 + $0xc] sm:$0xf]
        %v1556 = vld [vmem:[%s603] sm:$0x1]
        %v1558 = vlaneseq
        %v1559 = vshrl.u32 %v1558, 7
        %v1560 = vsub.s32 0, %v1559
        %v1561 = vrot.slane %v1556, %v1560
        %v1567 = vunpack.c.l.b16 %v1552
        %v1568 = vunpack.c.l.b16 %v1553
        %v1569 = vunpack.c.l.b16 %v1554
        %v1570 = vunpack.c.l.b16 %v1555
        %v1571 = vpack.c.b16 %v1568, %v1567
        %v1572 = vpack.c.b16 %v1570, %v1569
        %v1576 = vsel %vm623, %v1551, 0
        %1578 = vmatprep.subr.bf16.mxu0 0
        %1579 = vmatpush1.bf16.msra.mxu0 %v1571
        %1580 = vmatprep.subr.bf16.mxu0 0
        %1581 = vmatpush1.bf16.msra.mxu0 %v1572
        %1582 = vmatprep.subr.bf16.mxu0 0
        %1583 = vmatpush1.bf16.msra.mxu0 0
        %1584 = vmatprep.subr.bf16.mxu0 0
        %1585 = vmatpush1.bf16.msra.mxu0 0
        %1586 = vmatprep.subr.bf16.mxu0 0
        %1587 = vmatpush1.bf16.msra.mxu0 0
        %1588 = vmatprep.subr.bf16.mxu0 0
        %1589 = vmatpush1.bf16.msra.mxu0 0
        %1590 = vmatprep.subr.bf16.mxu0 0
        %1591 = vmatpush1.bf16.msra.mxu0 0
        %1592 = vmatprep.subr.bf16.mxu0 0
        %1593 = vmatpush1.bf16.msra.mxu0 0
        %1594 = vmatprep.subr.bf16.mxu0 0
        %1595 = vmatpush1.bf16.msra.mxu0 0
        %1596 = vmatprep.subr.bf16.mxu0 0
        %1597 = vmatpush1.bf16.msra.mxu0 0
        %1598 = vmatprep.subr.bf16.mxu0 0
        %1599 = vmatpush1.bf16.msra.mxu0 0
        %1600 = vmatprep.subr.bf16.mxu0 0
        %1601 = vmatpush1.bf16.msra.mxu0 0
        %1602 = vmatprep.subr.bf16.mxu0 0
        %1603 = vmatpush1.bf16.msra.mxu0 0
        %1604 = vmatprep.subr.bf16.mxu0 0
        %1605 = vmatpush1.bf16.msra.mxu0 0
        %1606 = vmatprep.subr.bf16.mxu0 0
        %1607 = vmatpush1.bf16.msra.mxu0 0
        %1608 = vmatprep.subr.bf16.mxu0 0
        %1609 = vmatpush1.bf16.msra.mxu0 0
        %1610 = vmatprep.mubr.bf16.mxu0 0
        %1611 = vmatmul.mubr.bf16.gmra.mrb[0].mxu0 %v1576
        %v1612 = vpop.f32.mrb[0].mxu0
        %v1613 = vadd.f32 %v1561, %v1612
        %v1614 = vpop.f32.mrb[0].mxu0
        %v1615 = vpop.f32.mrb[0].mxu0
        %v1616 = vpop.f32.mrb[0].mxu0
        %1617 = vdwg.mxu0
        %v1618 = vmul.f32 %v1613, 0.5
        %v1619 = vmul.f32 %v1613, 0.70710677
        %v1620 = verf.f32.pop %v1619
        %v1621 = vadd.f32 %v1620, 1.0
        %v1622 = vmul.f32 %v1618, %v1621
        %v1623 = vpack.c.bf16 %v1622, %v1622
        %v1624 = vld [vmem:[%s608] sm:$0xf]
        %v1625 = vld [vmem:[%s608 + $0x4] sm:$0xf]
        %v1626 = vld [vmem:[%s608 + $0x8] sm:$0xf]
        %v1627 = vld [vmem:[%s608 + $0xc] sm:$0xf]
        %v1628 = vld [vmem:[%s608 + $0x10] sm:$0xf]
        %v1629 = vld [vmem:[%s608 + $0x14] sm:$0xf]
        %v1630 = vld [vmem:[%s608 + $0x18] sm:$0xf]
        %v1631 = vld [vmem:[%s608 + $0x1c] sm:$0xf]
        %v1632 = vld [vmem:[%s611] sm:$0x1]
        %v1634 = vlaneseq
        %v1635 = vshrl.u32 %v1634, 7
        %v1636 = vsub.s32 0, %v1635
        %v1637 = vrot.slane %v1632, %v1636
        %v1647 = vunpack.c.l.b16 %v1624
        %v1648 = vunpack.c.l.b16 %v1625
        %v1649 = vunpack.c.l.b16 %v1626
        %v1650 = vunpack.c.l.b16 %v1627
        %v1651 = vunpack.c.l.b16 %v1628
        %v1652 = vunpack.c.l.b16 %v1629
        %v1653 = vunpack.c.l.b16 %v1630
        %v1654 = vunpack.c.l.b16 %v1631
        %v1655 = vpack.c.b16 %v1648, %v1647
        %v1656 = vpack.c.b16 %v1650, %v1649
        %v1657 = vpack.c.b16 %v1652, %v1651
        %v1658 = vpack.c.b16 %v1654, %v1653
        %vm1663 = vcmask 523264
        %v1665 = vsel %vm1663, %v1623, 0
        %1667 = vmatprep.subr.bf16.mxu0 0
        %1668 = vmatpush1.bf16.msra.mxu0 %v1655
        %1669 = vmatprep.subr.bf16.mxu0 0
        %1670 = vmatpush1.bf16.msra.mxu0 %v1656
        %1671 = vmatprep.subr.bf16.mxu0 0
        %1672 = vmatpush1.bf16.msra.mxu0 %v1657
        %1673 = vmatprep.subr.bf16.mxu0 0
        %1674 = vmatpush1.bf16.msra.mxu0 %v1658
        %1675 = vmatprep.subr.bf16.mxu0 0
        %1676 = vmatpush1.bf16.msra.mxu0 0
        %1677 = vmatprep.subr.bf16.mxu0 0
        %1678 = vmatpush1.bf16.msra.mxu0 0
        %1679 = vmatprep.subr.bf16.mxu0 0
        %1680 = vmatpush1.bf16.msra.mxu0 0
        %1681 = vmatprep.subr.bf16.mxu0 0
        %1682 = vmatpush1.bf16.msra.mxu0 0
        %1683 = vmatprep.subr.bf16.mxu0 0
        %1684 = vmatpush1.bf16.msra.mxu0 0
        %1685 = vmatprep.subr.bf16.mxu0 0
        %1686 = vmatpush1.bf16.msra.mxu0 0
        %1687 = vmatprep.subr.bf16.mxu0 0
        %1688 = vmatpush1.bf16.msra.mxu0 0
        %1689 = vmatprep.subr.bf16.mxu0 0
        %1690 = vmatpush1.bf16.msra.mxu0 0
        %1691 = vmatprep.subr.bf16.mxu0 0
        %1692 = vmatpush1.bf16.msra.mxu0 0
        %1693 = vmatprep.subr.bf16.mxu0 0
        %1694 = vmatpush1.bf16.msra.mxu0 0
        %1695 = vmatprep.subr.bf16.mxu0 0
        %1696 = vmatpush1.bf16.msra.mxu0 0
        %1697 = vmatprep.subr.bf16.mxu0 0
        %1698 = vmatpush1.bf16.msra.mxu0 0
        %1699 = vmatprep.mubr.bf16.mxu0 0
        %1700 = vmatmul.mubr.bf16.gmra.mrb[0].mxu0 %v1665
        %v1701 = vpop.f32.mrb[0].mxu0
        %v1702 = vadd.f32 %v1637, %v1701
        %v1703 = vpop.f32.mrb[0].mxu0
        %v1704 = vpop.f32.mrb[0].mxu0
        %v1705 = vpop.f32.mrb[0].mxu0
        %1706 = vdwg.mxu0
        %v1707 = vadd.f32 %v1702, %v1521
        %1708 = vst.msk [vmem:[#allocation2] sm:$0xff] %vm623, %v1707
        %p1709 = scmp.eq.s32.totalorder %s32, 1
        // Predicated region
        $region77: #{transformer_forward.1} parent=71 // pred_check
          %p1710 = pneg %p1709
        $region78: #{transformer_forward.1} parent=71 // pred_check_branch
          %1712 = sbr.rel (%p1710) target = $region80
        $region79: #{transformer_forward.1} parent=71 // pred_region
          %v1713 = vld [vmem:[%s11] sm:$0x1]
          %v1714 = vld [vmem:[%s12] sm:$0x1]
          %v1715 = vsel %vm623, %v1707, 0.0
          %1716 = vadd.xlane.f32.xlu0 %v1715
          %v1717 = vpop.xlane.xlu0 %1716
          %v1718 = vmul.f32 %v1717, %v627
          %v1719 = vsub.f32 %v1707, %v1718
          %v1720 = vmul.f32 %v1719, %v1719
          %v1721 = vsel %vm623, %v1720, 0.0
          %1722 = vadd.xlane.f32.xlu0 %v1721
          %v1723 = vpop.xlane.xlu0 %1722
          %v1724 = vmul.f32 %v1723, %v627
          %v1725 = vadd.f32 %v1724, 1e-05
          %v1726 = vrsqrt.pop %v1725
          %v1727 = vmul.f32 %v1719, %v1726
          %v1729 = vlaneseq
          %v1730 = vshrl.u32 %v1729, 7
          %v1731 = vsub.s32 0, %v1730
          %v1732 = vrot.slane %v1713, %v1731
          %v1734 = vmul.f32 %v1727, %v1732
          %v1736 = vlaneseq
          %v1737 = vshrl.u32 %v1736, 7
          %v1738 = vsub.s32 0, %v1737
          %v1739 = vrot.slane %v1714, %v1738
          %v1741 = vadd.f32 %v1734, %v1739
          %1742 = vst.msk [vmem:[%s569] sm:$0xff] %vm623, %v1741
        $region80: #{transformer_forward.1} parent=71 // pred_fallthru
          _
        %s1743 = sand.u32 %s375, 1
        %s1744 = scalar_lea.sflag [#allocation4], %s1743
        %s1745 = sand.u32 %s375, 1
        %s1746 = smul.addr %s1745, 8
        %s1747 = scalar_lea.vmem [#allocation3], %s1746
        // Predicated region
        $region81: #{transformer_forward.1} parent=71 // pred_check
          %p1748 = pneg %p385
        $region82: #{transformer_forward.1} parent=71 // pred_check_branch
          %1750 = sbr.rel (%p1748) target = $region84
        $region83: #{transformer_forward.1} parent=71 // pred_region
          %s1752 = ssub.s32 128, 128
          %1753 = vsyncadd %s1744, %s1752
          %s1754 = smul.addr %s31, 128
          %s1755 = scalar_lea.hbm %s13, %s1754
          %s1757 = sshll.u32 %s1747, 4
          %s1758 = int_to_ptr.vmem [resolvable:$true] %s1757
          %1760 = dma.vmem_to_hbm [thread:$0]  %s1758, 128, %s1755, %s1744
        $region84: #{transformer_forward.1} parent=71 // pred_fallthru
          _
      $region72: #{transformer_forward.1} parent=5 // pred_fallthru
        _
      %p1761 = scmp.le.s32.totalorder 2, %s22
      // Predicated region
      $region85: #{transformer_forward.1} parent=5 // pred_check
        %p1762 = pneg %p1761
      $region86: #{transformer_forward.1} parent=5 // pred_check_branch
        %1764 = sbr.rel (%p1762) target = $region88
      $region87: #{transformer_forward.1} parent=5 // pred_region
        %s1765 = ssub.s32 %s22, 2
        // Predicated region
        $region89: #{transformer_forward.1} parent=87 // pred_check
          %p1766 = pneg %p391
        $region90: #{transformer_forward.1} parent=87 // pred_check_branch
          %1768 = sbr.rel (%p1766) target = $region92
        $region91: #{transformer_forward.1} parent=87 // pred_region
          %s1769 = sand.u32 %s376, 1
          %s1770 = scalar_lea.sflag [#allocation4], %s1769
          %s1771 = sand.u32 %s376, 1
          %s1772 = smul.addr %s1771, 8
          %s1773 = scalar_lea.vmem [#allocation3], %s1772
          %1774 = dma.done %s1770, 128
        $region92: #{transformer_forward.1} parent=87 // pred_fallthru
          _
      $region88: #{transformer_forward.1} parent=5 // pred_fallthru
        _
    $region6: #{transformer_forward.1} parent=1 // loop_footer
      %s26 = sadd.s32 1, %s22
    $region7: #{transformer_forward.1} parent=1 // loop_footer_branch
      %21 = sbr.rel target = $region3
    $region8: #{transformer_forward.1} parent=1 // loop_exit
      _
    %1775 = vsyncpa [#allocation4], 1
    %s1776 = scalar_lea.sflag [#allocation4], 1
    %1777 = vsyncpa %s1776, 1

</llo_original>
